<compile_context>
chip_gen: v5e
topology: v5e:2x2
jax: 0.10.0
libtpu: 0.0.40
codegen_flags: <defaults>
</compile_context>

<pallas_src>
import math
from functools import partial

import numpy as np
import jax
import jax.numpy as jnp
from jax.experimental import pallas as pl
from jax.experimental.pallas import tpu as pltpu

# ---- model config (small, consistent with the module) ----
B = 2            # batch
N = 16           # sequence length
DIM = 128        # embedding dim
NUM_HEADS = 4
HEAD_DIM = DIM // NUM_HEADS
MLP_HIDDEN = int(DIM * 4.0)
LN_EPS = 1e-5
SCALE = HEAD_DIM ** (-0.5)
NEG_INF = -1e30


def _layernorm(h, gamma, beta):
    mu = jnp.mean(h, axis=-1, keepdims=True)
    var = jnp.mean((h - mu) ** 2, axis=-1, keepdims=True)
    return (h - mu) * jax.lax.rsqrt(var + LN_EPS) * gamma + beta


def _gelu_exact(u):
    # PyTorch nn.GELU default = exact erf-based GELU
    return 0.5 * u * (1.0 + jax.lax.erf(u * (1.0 / math.sqrt(2.0))))


def block_stack_kernel(x_ref,
                       mask_hd_ref,                # (BHN, C) bf16 0/1 head mask
                       sbias_ref,                  # (BN, BHN) f32 0 / -1e30
                       seg_ref,                    # (BHN, BHN) bf16 block-diag 1s
                       g1_ref, be1_ref,            # norm1 weight/bias  (1, C) f32
                       wqkv_ref,                   # (C, 3C) bf16, Q cols pre-scaled
                       wproj_ref, bproj_ref,       # (C, C) bf16, (1, C) f32
                       g2_ref, be2_ref,            # norm2 weight/bias  (1, C) f32
                       w1_ref, bm1_ref,            # (C, H) bf16, (1, H) f32
                       w2_ref, bm2_ref,            # (H, C) bf16, (1, C) f32
                       o_ref,
                       resid_ref,                  # VMEM scratch (BN, C) f32 carry
                       *, num_heads, dim, hidden, mlp_chunk):
    layer = pl.program_id(0)
    n_layers = pl.num_programs(0)

    @pl.when(layer == 0)
    def _():
        resid_ref[...] = x_ref[...]

    x = resid_ref[...]                                      # (BN, C) f32

    # ---------------- Attention branch ----------------
    h = _layernorm(x, g1_ref[...], be1_ref[...])            # (BN, C) f32
    qkv = jnp.dot(h.astype(jnp.bfloat16), wqkv_ref[...],
                  preferred_element_type=jnp.float32)       # (BN, 3C) f32
    q = qkv[:, 0 * dim:1 * dim].astype(jnp.bfloat16)        # (BN, C), pre-scaled
    k = qkv[:, 1 * dim:2 * dim].astype(jnp.bfloat16)
    v = qkv[:, 2 * dim:3 * dim].astype(jnp.bfloat16)

    mask_hd = mask_hd_ref[...]                              # (BHN, C) bf16

    # Block-diagonal K: packed row r = (head, batch, n) keeps token (batch, n)'s
    # head channels only (sublane replication + 0/1 mask; no MXU, stays bf16).
    k_bd = jnp.concatenate([k] * num_heads, axis=0) * mask_hd     # (BHN, C)

    # Scores for every (batch, head) pair in one GEMM; contract the channel axis
    # of both operands.  (TODO(synk): per review, verify via pl.lower_as_mlir
    # that Mosaic does not insert a large vxpose here; XLU has slack regardless.)
    s = jax.lax.dot_general(q, k_bd, (((1,), (1,)), ((), ())),
                            preferred_element_type=jnp.float32)   # (BN, BHN)
    s = s + sbias_ref[...]                                  # -1e30 cross-batch

    # Segmented softmax: per-row max is exact for per-segment softmax; the
    # per-(batch, head) denominator is broadcast back to every column of its
    # segment via the block-diagonal ones GEMM.
    m = jnp.max(s, axis=-1, keepdims=True)
    p = jnp.exp(s - m)                                      # 0 at cross-batch cols
    denom = jnp.dot(p.astype(jnp.bfloat16), seg_ref[...],
                    preferred_element_type=jnp.float32)     # (BN, BHN)
    inv = pl.reciprocal(denom + 1e-30, approx=True)         # EUP; 0*big = 0
    attn_p = (p * inv).astype(jnp.bfloat16)

    # PV lands directly in the concatenated (token, C) multi-head layout.
    v_bd = jnp.concatenate([v] * num_heads, axis=0) * mask_hd     # (BHN, C)
    attn = jnp.dot(attn_p, v_bd, preferred_element_type=jnp.float32)   # (BN, C)
    attn = jnp.dot(attn.astype(jnp.bfloat16), wproj_ref[...],
                   preferred_element_type=jnp.float32) + bproj_ref[...]
    x = x + attn                                            # residual 1 (f32)

    # ---------------- MLP branch (hidden dim processed in chunks) ----------------
    h2 = _layernorm(x, g2_ref[...], be2_ref[...]).astype(jnp.bfloat16)
    mo = jnp.zeros(x.shape, jnp.float32)
    for c0 in range(0, hidden, mlp_chunk):
        c1 = c0 + mlp_chunk
        u = jnp.dot(h2, w1_ref[:, c0:c1],
                    preferred_element_type=jnp.float32) + bm1_ref[:, c0:c1]
        u = _gelu_exact(u)                                  # exact erf GELU, f32
        mo = mo + jnp.dot(u.astype(jnp.bfloat16), w2_ref[c0:c1, :],
                          preferred_element_type=jnp.float32)
    x = x + mo + bm2_ref[...]                               # residual 2 (f32)

    resid_ref[...] = x

    @pl.when(layer == n_layers - 1)
    def _():
        o_ref[...] = x.astype(o_ref.dtype)


def packing_constants(batch, seq, num_heads, head_dim):
    """Compile-time packing constants for the block-diagonal attention layout.
    Packed axis order is (head, batch, n)."""
    bn = batch * seq
    dim = num_heads * head_dim
    bhn = num_heads * bn

    r = np.arange(bhn)[:, None]
    c = np.arange(dim)[None, :]
    mask_hd = ((r // bn) == (c // head_dim)).astype(np.float32)        # (BHN, C)

    qr = np.arange(bn)[:, None]
    pc = np.arange(bhn)[None, :]
    same_batch = (qr // seq) == ((pc % bn) // seq)
    sbias = np.where(same_batch, 0.0, NEG_INF).astype(np.float32)      # (BN, BHN)

    rr = np.arange(bhn)[:, None]
    cc = np.arange(bhn)[None, :]
    seg = ((rr // seq) == (cc // seq)).astype(np.float32)              # (BHN, BHN)

    return (jnp.asarray(mask_hd, jnp.bfloat16),
            jnp.asarray(sbias, jnp.float32),
            jnp.asarray(seg, jnp.bfloat16))


def prepare_params(layer_params):
    """Stack per-layer Block parameters into (L, ...) arrays, fold the attention
    scale into W_qkv's Q columns, store all GEMM weights in bf16."""
    def stack(name):
        return jnp.stack([p[name] for p in layer_params], axis=0)

    wqkv = stack("wqkv").astype(jnp.float32)
    d = wqkv.shape[1]
    wqkv = jnp.concatenate([wqkv[:, :, :d] * SCALE, wqkv[:, :, d:]], axis=2)
    return {
        "g1": stack("g1").astype(jnp.float32),
        "be1": stack("be1").astype(jnp.float32),
        "wqkv": wqkv.astype(jnp.bfloat16),
        "wproj": stack("wproj").astype(jnp.bfloat16),
        "bproj": stack("bproj").astype(jnp.float32),
        "g2": stack("g2").astype(jnp.float32),
        "be2": stack("be2").astype(jnp.float32),
        "w1": stack("w1").astype(jnp.bfloat16),
        "bm1": stack("bm1").astype(jnp.float32),
        "w2": stack("w2").astype(jnp.bfloat16),
        "bm2": stack("bm2").astype(jnp.float32),
    }


def block_forward(x, prep):
    """x: (B, N, C) f32.  prep: stacked (L, ...) params from prepare_params.
    Applies L fused Blocks in one pallas_call (L=1 == the PyTorch module)."""
    b, n, c = x.shape
    hid = prep["w1"].shape[-1]
    n_layers = prep["wqkv"].shape[0]
    bn = b * n
    bhn = NUM_HEADS * bn
    mlp_chunk = 256 if (hid % 256 == 0 and hid >= 256) else hid

    mask_hd, sbias, seg = packing_constants(b, n, NUM_HEADS, c // NUM_HEADS)
    x2 = x.reshape(bn, c).astype(jnp.float32)

    const2d = lambda shape: pl.BlockSpec(shape, lambda l: (0, 0))
    per_layer = lambda shape: pl.BlockSpec((None,) + shape, lambda l: (l, 0, 0))

    in_specs = [
        const2d((bn, c)),                               # x (whole batch fused)
        const2d((bhn, c)),                              # head mask (bf16)
        const2d((bn, bhn)),                             # additive score bias
        const2d((bhn, bhn)),                            # segment-ones (bf16)
        per_layer((1, c)), per_layer((1, c)),           # norm1 gamma, beta
        per_layer((c, 3 * c)),                          # W_qkv (bf16)
        per_layer((c, c)), per_layer((1, c)),           # W_proj (bf16), b_proj
        per_layer((1, c)), per_layer((1, c)),           # norm2 gamma, beta
        per_layer((c, hid)), per_layer((1, hid)),       # W_fc1 (bf16), b_fc1
        per_layer((hid, c)), per_layer((1, c)),         # W_fc2 (bf16), b_fc2
    ]

    kern = partial(block_stack_kernel, num_heads=NUM_HEADS, dim=c,
                   hidden=hid, mlp_chunk=mlp_chunk)

    out = pl.pallas_call(
        kern,
        out_shape=jax.ShapeDtypeStruct((bn, c), x2.dtype),
        grid=(n_layers,),
        in_specs=in_specs,
        out_specs=pl.BlockSpec((bn, c), lambda l: (0, 0)),
        scratch_shapes=[pltpu.VMEM((bn, c), jnp.float32)],   # residual carry
        compiler_params=pltpu.CompilerParams(
            dimension_semantics=("arbitrary",)),
    )(x2, mask_hd, sbias, seg,
      prep["g1"], prep["be1"],
      prep["wqkv"],
      prep["wproj"], prep["bproj"],
      prep["g2"], prep["be2"],
      prep["w1"], prep["bm1"],
      prep["w2"], prep["bm2"])
    return out.reshape(b, n, c)


# -------- pure-JAX f32 reference for ONE Block (same math, unscaled params) --------
def block_reference(x, p):
    x = x.astype(jnp.float32)
    h = _layernorm(x, p["g1"], p["be1"])
    qkv = h @ p["wqkv"]                                        # (B, N, 3C)
    q, k, v = jnp.split(qkv, 3, axis=-1)
    def heads(t):   # (B, N, C) -> (B, H, N, D)
        return t.reshape(x.shape[0], x.shape[1], NUM_HEADS, HEAD_DIM).transpose(0, 2, 1, 3)
    q, k, v = heads(q), heads(k), heads(v)
    s = jnp.einsum("bhqd,bhkd->bhqk", q, k) * SCALE
    a = jax.nn.softmax(s, axis=-1)
    o = jnp.einsum("bhqk,bhkd->bhqd", a, v).transpose(0, 2, 1, 3).reshape(x.shape)
    x = x + (o @ p["wproj"] + p["bproj"])
    h2 = _layernorm(x, p["g2"], p["be2"])
    u = _gelu_exact(h2 @ p["w1"] + p["bm1"])
    return x + (u @ p["w2"] + p["bm2"])


def make_params(key):
    ks = jax.random.split(key, 6)
    std = 0.02
    return {
        "g1":    jnp.ones((1, DIM), jnp.float32),
        "be1":   jnp.zeros((1, DIM), jnp.float32),
        "wqkv":  std * jax.random.normal(ks[0], (DIM, 3 * DIM), jnp.float32),
        "wproj": std * jax.random.normal(ks[1], (DIM, DIM), jnp.float32),
        "bproj": std * jax.random.normal(ks[2], (1, DIM), jnp.float32),
        "g2":    jnp.ones((1, DIM), jnp.float32),
        "be2":   jnp.zeros((1, DIM), jnp.float32),
        "w1":    std * jax.random.normal(ks[3], (DIM, MLP_HIDDEN), jnp.float32),
        "bm1":   jnp.zeros((1, MLP_HIDDEN), jnp.float32),
        "w2":    std * jax.random.normal(ks[4], (MLP_HIDDEN, DIM), jnp.float32),
        "bm2":   jnp.zeros((1, DIM), jnp.float32),
    }


if __name__ == "__main__":
    key = jax.random.PRNGKey(0)
    kx, k1, k2 = jax.random.split(key, 3)
    x = jax.random.normal(kx, (B, N, DIM), jnp.float32)
    layer_params = [make_params(k1), make_params(k2)]

    # --- single Block: matches the PyTorch module forward ---
    prep1 = prepare_params(layer_params[:1])
    out1 = jax.block_until_ready(block_forward(x, prep1))
    ref1 = block_reference(x, layer_params[0])
    assert out1.shape == (B, N, DIM)
    # bf16 matmul operands (f32 accumulation) + approx reciprocal -> relaxed tol
    assert float(jnp.max(jnp.abs(out1 - ref1))) < 2e-2, "single-block mismatch"

    # --- fused 2-layer stack in one pallas_call (layer-pipelined grid) ---
    prep2 = prepare_params(layer_params)
    out2 = jax.block_until_ready(block_forward(x, prep2))
    ref2 = block_reference(ref1, layer_params[1])
    assert float(jnp.max(jnp.abs(out2 - ref2))) < 4e-2, "stacked-block mismatch"

    print("KERNEL_OK")
</pallas_src>

<mosaic_0001>
module attributes {stable_mosaic.version = 11 : i64} {
  func.func @block_stack_kernel(%arg0: i32, %arg1: memref<32x128xf32, #tpu.memory_space<vmem>>, %arg2: memref<128x128xbf16, #tpu.memory_space<vmem>>, %arg3: memref<32x128xf32, #tpu.memory_space<vmem>>, %arg4: memref<128x128xbf16, #tpu.memory_space<vmem>>, %arg5: memref<1x1x128xf32, #tpu.memory_space<vmem>>, %arg6: memref<1x1x128xf32, #tpu.memory_space<vmem>>, %arg7: memref<1x128x384xbf16, #tpu.memory_space<vmem>>, %arg8: memref<1x128x128xbf16, #tpu.memory_space<vmem>>, %arg9: memref<1x1x128xf32, #tpu.memory_space<vmem>>, %arg10: memref<1x1x128xf32, #tpu.memory_space<vmem>>, %arg11: memref<1x1x128xf32, #tpu.memory_space<vmem>>, %arg12: memref<1x128x512xbf16, #tpu.memory_space<vmem>>, %arg13: memref<1x1x512xf32, #tpu.memory_space<vmem>>, %arg14: memref<1x512x128xbf16, #tpu.memory_space<vmem>>, %arg15: memref<1x1x128xf32, #tpu.memory_space<vmem>>, %arg16: memref<32x128xf32, #tpu.memory_space<vmem>>, %arg17: memref<32x128xf32, #tpu.memory_space<vmem>>) attributes {dimension_semantics = [#tpu.dimension_semantics<arbitrary>], iteration_bounds = array<i64: 1>, scalar_prefetch = 0 : i64, scratch_operands = 1 : i64, tpu.core_type = #tpu.core_type<tc>, window_params = [{pipeline_mode = #tpu.pipeline_mode<synchronous>, transform_indices = @transform_0, window_bounds = array<i64: 32, 128>}, {pipeline_mode = #tpu.pipeline_mode<synchronous>, transform_indices = @transform_1, window_bounds = array<i64: 128, 128>}, {pipeline_mode = #tpu.pipeline_mode<synchronous>, transform_indices = @transform_2, window_bounds = array<i64: 32, 128>}, {pipeline_mode = #tpu.pipeline_mode<synchronous>, transform_indices = @transform_3, window_bounds = array<i64: 128, 128>}, {transform_indices = @transform_4, window_bounds = array<i64: 1, 1, 128>}, {transform_indices = @transform_5, window_bounds = array<i64: 1, 1, 128>}, {transform_indices = @transform_6, window_bounds = array<i64: 1, 128, 384>}, {transform_indices = @transform_7, window_bounds = array<i64: 1, 128, 128>}, {transform_indices = @transform_8, window_bounds = array<i64: 1, 1, 128>}, {transform_indices = @transform_9, window_bounds = array<i64: 1, 1, 128>}, {transform_indices = @transform_10, window_bounds = array<i64: 1, 1, 128>}, {transform_indices = @transform_11, window_bounds = array<i64: 1, 128, 512>}, {transform_indices = @transform_12, window_bounds = array<i64: 1, 1, 512>}, {transform_indices = @transform_13, window_bounds = array<i64: 1, 512, 128>}, {transform_indices = @transform_14, window_bounds = array<i64: 1, 1, 128>}, {pipeline_mode = #tpu.pipeline_mode<synchronous>, transform_indices = @transform_15, window_bounds = array<i64: 32, 128>}]} {
    %c0_i32 = arith.constant 0 : i32
    %0 = arith.cmpi eq, %arg0, %c0_i32 : i32
    %1 = arith.extui %0 : i1 to i32
    %c0_i32_0 = arith.constant 0 : i32
    %2 = arith.cmpi ne, %1, %c0_i32_0 : i32
    scf.if %2 {
      %c0_80 = arith.constant 0 : index
      %c0_81 = arith.constant 0 : index
      %148 = vector.load %arg1[%c0_80, %c0_81] : memref<32x128xf32, #tpu.memory_space<vmem>>, vector<32x128xf32>
      %c0_82 = arith.constant 0 : index
      %c0_83 = arith.constant 0 : index
      %149 = vector.load %arg17[%c0_82, %c0_83] : memref<32x128xf32, #tpu.memory_space<vmem>>, vector<32x128xf32>
      tpu.vector_store %arg17[%c0_82, %c0_83], %148 {strides = array<i32>} : memref<32x128xf32, #tpu.memory_space<vmem>>, vector<32x128xf32>,
    } else {
    }
    %c0 = arith.constant 0 : index
    %c0_1 = arith.constant 0 : index
    %3 = vector.load %arg17[%c0, %c0_1] : memref<32x128xf32, #tpu.memory_space<vmem>>, vector<32x128xf32>
    %c0_2 = arith.constant 0 : index
    %c0_3 = arith.constant 0 : index
    %c0_4 = arith.constant 0 : index
    %4 = vector.load %arg5[%c0_2, %c0_3, %c0_4] : memref<1x1x128xf32, #tpu.memory_space<vmem>>, vector<1x1x128xf32>
    %5 = vector.shape_cast %4 : vector<1x1x128xf32> to vector<1x128xf32>
    %c0_5 = arith.constant 0 : index
    %c0_6 = arith.constant 0 : index
    %c0_7 = arith.constant 0 : index
    %6 = vector.load %arg6[%c0_5, %c0_6, %c0_7] : memref<1x1x128xf32, #tpu.memory_space<vmem>>, vector<1x1x128xf32>
    %7 = vector.shape_cast %6 : vector<1x1x128xf32> to vector<1x128xf32>
    %cst = arith.constant dense<0.000000e+00> : vector<32xf32>
    %8 = vector.multi_reduction <add>, %3, %cst [1] : vector<32x128xf32> to vector<32xf32>
    %9 = vector.shape_cast %8 : vector<32xf32> to vector<32x1xf32>
    %cst_8 = arith.constant 1.280000e+02 : f32
    %10 = vector.broadcast %cst_8 : f32 to vector<32x1xf32>
    %11 = arith.divf %9, %10 : vector<32x1xf32>
    %12 = vector.broadcast %11 : vector<32x1xf32> to vector<32x128xf32>
    %13 = arith.subf %3, %12 : vector<32x128xf32>
    %14 = arith.mulf %13, %13 : vector<32x128xf32>
    %cst_9 = arith.constant dense<0.000000e+00> : vector<32xf32>
    %15 = vector.multi_reduction <add>, %14, %cst_9 [1] : vector<32x128xf32> to vector<32xf32>
    %16 = vector.shape_cast %15 : vector<32xf32> to vector<32x1xf32>
    %cst_10 = arith.constant 1.280000e+02 : f32
    %17 = vector.broadcast %cst_10 : f32 to vector<32x1xf32>
    %18 = arith.divf %16, %17 : vector<32x1xf32>
    %19 = vector.broadcast %11 : vector<32x1xf32> to vector<32x128xf32>
    %20 = arith.subf %3, %19 : vector<32x128xf32>
    %cst_11 = arith.constant 9.99999974E-6 : f32
    %21 = vector.broadcast %cst_11 : f32 to vector<32x1xf32>
    %22 = arith.addf %18, %21 : vector<32x1xf32>
    %23 = math.rsqrt %22 : vector<32x1xf32>
    %24 = vector.broadcast %23 : vector<32x1xf32> to vector<32x128xf32>
    %25 = arith.mulf %20, %24 : vector<32x128xf32>
    %26 = vector.broadcast %5 : vector<1x128xf32> to vector<32x128xf32>
    %27 = arith.mulf %25, %26 : vector<32x128xf32>
    %28 = vector.broadcast %7 : vector<1x128xf32> to vector<32x128xf32>
    %29 = arith.addf %27, %28 : vector<32x128xf32>
    %30 = arith.truncf %29 : vector<32x128xf32> to vector<32x128xbf16>
    %c0_12 = arith.constant 0 : index
    %c0_13 = arith.constant 0 : index
    %c0_14 = arith.constant 0 : index
    %31 = vector.load %arg7[%c0_12, %c0_13, %c0_14] : memref<1x128x384xbf16, #tpu.memory_space<vmem>>, vector<1x128x384xbf16>
    %32 = vector.shape_cast %31 : vector<1x128x384xbf16> to vector<128x384xbf16>
    %cst_15 = arith.constant dense<0.000000e+00> : vector<32x384xf32>
    %33 = tpu.matmul %30, %32, %cst_15 {dimension_numbers = #tpu.dot_dimension_numbers<[1], [0], [0], [1], [0, 0, 1, 1], [], []>} : vector<32x128xbf16>, vector<128x384xbf16>, vector<32x384xf32> -> vector<32x384xf32>
    %34 = vector.extract_strided_slice %33 {offsets = [0, 0], sizes = [32, 128], strides = [1, 1]} : vector<32x384xf32> to vector<32x128xf32>
    %35 = arith.truncf %34 : vector<32x128xf32> to vector<32x128xbf16>
    %36 = vector.extract_strided_slice %33 {offsets = [0, 128], sizes = [32, 128], strides = [1, 1]} : vector<32x384xf32> to vector<32x128xf32>
    %37 = arith.truncf %36 : vector<32x128xf32> to vector<32x128xbf16>
    %38 = vector.extract_strided_slice %33 {offsets = [0, 256], sizes = [32, 128], strides = [1, 1]} : vector<32x384xf32> to vector<32x128xf32>
    %39 = arith.truncf %38 : vector<32x128xf32> to vector<32x128xbf16>
    %c0_16 = arith.constant 0 : index
    %c0_17 = arith.constant 0 : index
    %40 = vector.load %arg2[%c0_16, %c0_17] : memref<128x128xbf16, #tpu.memory_space<vmem>>, vector<128x128xbf16>
    %41 = tpu.concatenate %37, %37, %37, %37 in 0 : vector<32x128xbf16>, vector<32x128xbf16>, vector<32x128xbf16>, vector<32x128xbf16> -> vector<128x128xbf16>
    %42 = arith.mulf %41, %40 : vector<128x128xbf16>
    %cst_18 = arith.constant dense<0.000000e+00> : vector<32x128xf32>
    %43 = tpu.matmul %35, %42, %cst_18 {dimension_numbers = #tpu.dot_dimension_numbers<[1], [1], [0], [0], [0, 0, 1, 0], [], []>} : vector<32x128xbf16>, vector<128x128xbf16>, vector<32x128xf32> -> vector<32x128xf32>
    %c0_19 = arith.constant 0 : index
    %c0_20 = arith.constant 0 : index
    %44 = vector.load %arg3[%c0_19, %c0_20] : memref<32x128xf32, #tpu.memory_space<vmem>>, vector<32x128xf32>
    %45 = arith.addf %43, %44 : vector<32x128xf32>
    %cst_21 = arith.constant dense<0xFF800000> : vector<32xf32>
    %46 = vector.multi_reduction <maximumf>, %45, %cst_21 [1] : vector<32x128xf32> to vector<32xf32>
    %47 = vector.shape_cast %46 : vector<32xf32> to vector<32x1xf32>
    %48 = vector.broadcast %47 : vector<32x1xf32> to vector<32x128xf32>
    %49 = arith.subf %45, %48 : vector<32x128xf32>
    %50 = math.exp %49 : vector<32x128xf32>
    %51 = arith.truncf %50 : vector<32x128xf32> to vector<32x128xbf16>
    %c0_22 = arith.constant 0 : index
    %c0_23 = arith.constant 0 : index
    %52 = vector.load %arg4[%c0_22, %c0_23] : memref<128x128xbf16, #tpu.memory_space<vmem>>, vector<128x128xbf16>
    %cst_24 = arith.constant dense<0.000000e+00> : vector<32x128xf32>
    %53 = tpu.matmul %51, %52, %cst_24 {dimension_numbers = #tpu.dot_dimension_numbers<[1], [0], [0], [1], [0, 0, 1, 1], [], []>} : vector<32x128xbf16>, vector<128x128xbf16>, vector<32x128xf32> -> vector<32x128xf32>
    %cst_25 = arith.constant 1.000000e-30 : f32
    %54 = vector.broadcast %cst_25 : f32 to vector<32x128xf32>
    %55 = arith.addf %53, %54 : vector<32x128xf32>
    %56 = tpu.reciprocal %55 {approx = true} : vector<32x128xf32> -> vector<32x128xf32>
    %57 = arith.mulf %50, %56 : vector<32x128xf32>
    %58 = arith.truncf %57 : vector<32x128xf32> to vector<32x128xbf16>
    %59 = tpu.concatenate %39, %39, %39, %39 in 0 : vector<32x128xbf16>, vector<32x128xbf16>, vector<32x128xbf16>, vector<32x128xbf16> -> vector<128x128xbf16>
    %60 = arith.mulf %59, %40 : vector<128x128xbf16>
    %cst_26 = arith.constant dense<0.000000e+00> : vector<32x128xf32>
    %61 = tpu.matmul %58, %60, %cst_26 {dimension_numbers = #tpu.dot_dimension_numbers<[1], [0], [0], [1], [0, 0, 1, 1], [], []>} : vector<32x128xbf16>, vector<128x128xbf16>, vector<32x128xf32> -> vector<32x128xf32>
    %62 = arith.truncf %61 : vector<32x128xf32> to vector<32x128xbf16>
    %c0_27 = arith.constant 0 : index
    %c0_28 = arith.constant 0 : index
    %c0_29 = arith.constant 0 : index
    %63 = vector.load %arg8[%c0_27, %c0_28, %c0_29] : memref<1x128x128xbf16, #tpu.memory_space<vmem>>, vector<1x128x128xbf16>
    %64 = vector.shape_cast %63 : vector<1x128x128xbf16> to vector<128x128xbf16>
    %cst_30 = arith.constant dense<0.000000e+00> : vector<32x128xf32>
    %65 = tpu.matmul %62, %64, %cst_30 {dimension_numbers = #tpu.dot_dimension_numbers<[1], [0], [0], [1], [0, 0, 1, 1], [], []>} : vector<32x128xbf16>, vector<128x128xbf16>, vector<32x128xf32> -> vector<32x128xf32>
    %c0_31 = arith.constant 0 : index
    %c0_32 = arith.constant 0 : index
    %c0_33 = arith.constant 0 : index
    %66 = vector.load %arg9[%c0_31, %c0_32, %c0_33] : memref<1x1x128xf32, #tpu.memory_space<vmem>>, vector<1x1x128xf32>
    %67 = vector.shape_cast %66 : vector<1x1x128xf32> to vector<1x128xf32>
    %68 = vector.broadcast %67 : vector<1x128xf32> to vector<32x128xf32>
    %69 = arith.addf %65, %68 : vector<32x128xf32>
    %70 = arith.addf %3, %69 : vector<32x128xf32>
    %c0_34 = arith.constant 0 : index
    %c0_35 = arith.constant 0 : index
    %c0_36 = arith.constant 0 : index
    %71 = vector.load %arg10[%c0_34, %c0_35, %c0_36] : memref<1x1x128xf32, #tpu.memory_space<vmem>>, vector<1x1x128xf32>
    %72 = vector.shape_cast %71 : vector<1x1x128xf32> to vector<1x128xf32>
    %c0_37 = arith.constant 0 : index
    %c0_38 = arith.constant 0 : index
    %c0_39 = arith.constant 0 : index
    %73 = vector.load %arg11[%c0_37, %c0_38, %c0_39] : memref<1x1x128xf32, #tpu.memory_space<vmem>>, vector<1x1x128xf32>
    %74 = vector.shape_cast %73 : vector<1x1x128xf32> to vector<1x128xf32>
    %cst_40 = arith.constant dense<0.000000e+00> : vector<32xf32>
    %75 = vector.multi_reduction <add>, %70, %cst_40 [1] : vector<32x128xf32> to vector<32xf32>
    %76 = vector.shape_cast %75 : vector<32xf32> to vector<32x1xf32>
    %cst_41 = arith.constant 1.280000e+02 : f32
    %77 = vector.broadcast %cst_41 : f32 to vector<32x1xf32>
    %78 = arith.divf %76, %77 : vector<32x1xf32>
    %79 = vector.broadcast %78 : vector<32x1xf32> to vector<32x128xf32>
    %80 = arith.subf %70, %79 : vector<32x128xf32>
    %81 = arith.mulf %80, %80 : vector<32x128xf32>
    %cst_42 = arith.constant dense<0.000000e+00> : vector<32xf32>
    %82 = vector.multi_reduction <add>, %81, %cst_42 [1] : vector<32x128xf32> to vector<32xf32>
    %83 = vector.shape_cast %82 : vector<32xf32> to vector<32x1xf32>
    %cst_43 = arith.constant 1.280000e+02 : f32
    %84 = vector.broadcast %cst_43 : f32 to vector<32x1xf32>
    %85 = arith.divf %83, %84 : vector<32x1xf32>
    %86 = vector.broadcast %78 : vector<32x1xf32> to vector<32x128xf32>
    %87 = arith.subf %70, %86 : vector<32x128xf32>
    %cst_44 = arith.constant 9.99999974E-6 : f32
    %88 = vector.broadcast %cst_44 : f32 to vector<32x1xf32>
    %89 = arith.addf %85, %88 : vector<32x1xf32>
    %90 = math.rsqrt %89 : vector<32x1xf32>
    %91 = vector.broadcast %90 : vector<32x1xf32> to vector<32x128xf32>
    %92 = arith.mulf %87, %91 : vector<32x128xf32>
    %93 = vector.broadcast %72 : vector<1x128xf32> to vector<32x128xf32>
    %94 = arith.mulf %92, %93 : vector<32x128xf32>
    %95 = vector.broadcast %74 : vector<1x128xf32> to vector<32x128xf32>
    %96 = arith.addf %94, %95 : vector<32x128xf32>
    %97 = arith.truncf %96 : vector<32x128xf32> to vector<32x128xbf16>
    %cst_45 = arith.constant 0.000000e+00 : f32
    %98 = vector.broadcast %cst_45 : f32 to vector<32x128xf32>
    %c0_46 = arith.constant 0 : index
    %c0_47 = arith.constant 0 : index
    %c0_48 = arith.constant 0 : index
    %99 = vector.load %arg12[%c0_46, %c0_47, %c0_48] : memref<1x128x512xbf16, #tpu.memory_space<vmem>>, vector<1x128x256xbf16>
    %100 = vector.shape_cast %99 : vector<1x128x256xbf16> to vector<128x256xbf16>
    %cst_49 = arith.constant dense<0.000000e+00> : vector<32x256xf32>
    %101 = tpu.matmul %97, %100, %cst_49 {dimension_numbers = #tpu.dot_dimension_numbers<[1], [0], [0], [1], [0, 0, 1, 1], [], []>} : vector<32x128xbf16>, vector<128x256xbf16>, vector<32x256xf32> -> vector<32x256xf32>
    %c0_50 = arith.constant 0 : index
    %c0_51 = arith.constant 0 : index
    %c0_52 = arith.constant 0 : index
    %102 = vector.load %arg13[%c0_50, %c0_51, %c0_52] : memref<1x1x512xf32, #tpu.memory_space<vmem>>, vector<1x1x256xf32>
    %103 = vector.shape_cast %102 : vector<1x1x256xf32> to vector<1x256xf32>
    %104 = vector.broadcast %103 : vector<1x256xf32> to vector<32x256xf32>
    %105 = arith.addf %101, %104 : vector<32x256xf32>
    %cst_53 = arith.constant 5.000000e-01 : f32
    %106 = vector.broadcast %cst_53 : f32 to vector<32x256xf32>
    %107 = arith.mulf %106, %105 : vector<32x256xf32>
    %cst_54 = arith.constant 0.707106769 : f32
    %108 = vector.broadcast %cst_54 : f32 to vector<32x256xf32>
    %109 = arith.mulf %105, %108 : vector<32x256xf32>
    %110 = math.erf %109 : vector<32x256xf32>
    %cst_55 = arith.constant 1.000000e+00 : f32
    %111 = vector.broadcast %cst_55 : f32 to vector<32x256xf32>
    %112 = arith.addf %111, %110 : vector<32x256xf32>
    %113 = arith.mulf %107, %112 : vector<32x256xf32>
    %114 = arith.truncf %113 : vector<32x256xf32> to vector<32x256xbf16>
    %c0_56 = arith.constant 0 : index
    %c0_57 = arith.constant 0 : index
    %c0_58 = arith.constant 0 : index
    %115 = vector.load %arg14[%c0_56, %c0_57, %c0_58] : memref<1x512x128xbf16, #tpu.memory_space<vmem>>, vector<1x256x128xbf16>
    %116 = vector.shape_cast %115 : vector<1x256x128xbf16> to vector<256x128xbf16>
    %cst_59 = arith.constant dense<0.000000e+00> : vector<32x128xf32>
    %117 = tpu.matmul %114, %116, %cst_59 {dimension_numbers = #tpu.dot_dimension_numbers<[1], [0], [0], [1], [0, 0, 1, 1], [], []>} : vector<32x256xbf16>, vector<256x128xbf16>, vector<32x128xf32> -> vector<32x128xf32>
    %118 = arith.addf %98, %117 : vector<32x128xf32>
    %c0_60 = arith.constant 0 : index
    %c0_61 = arith.constant 0 : index
    %c256 = arith.constant 256 : index
    %119 = vector.load %arg12[%c0_60, %c0_61, %c256] : memref<1x128x512xbf16, #tpu.memory_space<vmem>>, vector<1x128x256xbf16>
    %120 = vector.shape_cast %119 : vector<1x128x256xbf16> to vector<128x256xbf16>
    %cst_62 = arith.constant dense<0.000000e+00> : vector<32x256xf32>
    %121 = tpu.matmul %97, %120, %cst_62 {dimension_numbers = #tpu.dot_dimension_numbers<[1], [0], [0], [1], [0, 0, 1, 1], [], []>} : vector<32x128xbf16>, vector<128x256xbf16>, vector<32x256xf32> -> vector<32x256xf32>
    %c0_63 = arith.constant 0 : index
    %c0_64 = arith.constant 0 : index
    %c256_65 = arith.constant 256 : index
    %122 = vector.load %arg13[%c0_63, %c0_64, %c256_65] : memref<1x1x512xf32, #tpu.memory_space<vmem>>, vector<1x1x256xf32>
    %123 = vector.shape_cast %122 : vector<1x1x256xf32> to vector<1x256xf32>
    %124 = vector.broadcast %123 : vector<1x256xf32> to vector<32x256xf32>
    %125 = arith.addf %121, %124 : vector<32x256xf32>
    %cst_66 = arith.constant 5.000000e-01 : f32
    %126 = vector.broadcast %cst_66 : f32 to vector<32x256xf32>
    %127 = arith.mulf %126, %125 : vector<32x256xf32>
    %cst_67 = arith.constant 0.707106769 : f32
    %128 = vector.broadcast %cst_67 : f32 to vector<32x256xf32>
    %129 = arith.mulf %125, %128 : vector<32x256xf32>
    %130 = math.erf %129 : vector<32x256xf32>
    %cst_68 = arith.constant 1.000000e+00 : f32
    %131 = vector.broadcast %cst_68 : f32 to vector<32x256xf32>
    %132 = arith.addf %131, %130 : vector<32x256xf32>
    %133 = arith.mulf %127, %132 : vector<32x256xf32>
    %134 = arith.truncf %133 : vector<32x256xf32> to vector<32x256xbf16>
    %c0_69 = arith.constant 0 : index
    %c256_70 = arith.constant 256 : index
    %c0_71 = arith.constant 0 : index
    %135 = vector.load %arg14[%c0_69, %c256_70, %c0_71] : memref<1x512x128xbf16, #tpu.memory_space<vmem>>, vector<1x256x128xbf16>
    %136 = vector.shape_cast %135 : vector<1x256x128xbf16> to vector<256x128xbf16>
    %cst_72 = arith.constant dense<0.000000e+00> : vector<32x128xf32>
    %137 = tpu.matmul %134, %136, %cst_72 {dimension_numbers = #tpu.dot_dimension_numbers<[1], [0], [0], [1], [0, 0, 1, 1], [], []>} : vector<32x256xbf16>, vector<256x128xbf16>, vector<32x128xf32> -> vector<32x128xf32>
    %138 = arith.addf %118, %137 : vector<32x128xf32>
    %139 = arith.addf %70, %138 : vector<32x128xf32>
    %c0_73 = arith.constant 0 : index
    %c0_74 = arith.constant 0 : index
    %c0_75 = arith.constant 0 : index
    %140 = vector.load %arg15[%c0_73, %c0_74, %c0_75] : memref<1x1x128xf32, #tpu.memory_space<vmem>>, vector<1x1x128xf32>
    %141 = vector.shape_cast %140 : vector<1x1x128xf32> to vector<1x128xf32>
    %142 = vector.broadcast %141 : vector<1x128xf32> to vector<32x128xf32>
    %143 = arith.addf %139, %142 : vector<32x128xf32>
    %c0_76 = arith.constant 0 : index
    %c0_77 = arith.constant 0 : index
    %144 = vector.load %arg17[%c0_76, %c0_77] : memref<32x128xf32, #tpu.memory_space<vmem>>, vector<32x128xf32>
    tpu.vector_store %arg17[%c0_76, %c0_77], %143 {strides = array<i32>} : memref<32x128xf32, #tpu.memory_space<vmem>>, vector<32x128xf32>,
    %c0_i32_78 = arith.constant 0 : i32
    %145 = arith.cmpi eq, %arg0, %c0_i32_78 : i32
    %146 = arith.extui %145 : i1 to i32
    %c0_i32_79 = arith.constant 0 : i32
    %147 = arith.cmpi ne, %146, %c0_i32_79 : i32
    scf.if %147 {
      %c0_80 = arith.constant 0 : index
      %c0_81 = arith.constant 0 : index
      %148 = vector.load %arg16[%c0_80, %c0_81] : memref<32x128xf32, #tpu.memory_space<vmem>>, vector<32x128xf32>
      tpu.vector_store %arg16[%c0_80, %c0_81], %143 {strides = array<i32>} : memref<32x128xf32, #tpu.memory_space<vmem>>, vector<32x128xf32>,
    } else {
    }
    return
  }
  func.func @transform_0(%arg0: i32) -> (i32, i32) {
    %c0_i32 = arith.constant 0 : i32
    %c0_i32_0 = arith.constant 0 : i32
    %c0_i32_1 = arith.constant 0 : i32
    return %c0_i32, %c0_i32_0 : i32, i32
  }
  func.func @transform_1(%arg0: i32) -> (i32, i32) {
    %c0_i32 = arith.constant 0 : i32
    %c0_i32_0 = arith.constant 0 : i32
    %c0_i32_1 = arith.constant 0 : i32
    return %c0_i32, %c0_i32_0 : i32, i32
  }
  func.func @transform_2(%arg0: i32) -> (i32, i32) {
    %c0_i32 = arith.constant 0 : i32
    %c0_i32_0 = arith.constant 0 : i32
    %c0_i32_1 = arith.constant 0 : i32
    return %c0_i32, %c0_i32_0 : i32, i32
  }
  func.func @transform_3(%arg0: i32) -> (i32, i32) {
    %c0_i32 = arith.constant 0 : i32
    %c0_i32_0 = arith.constant 0 : i32
    %c0_i32_1 = arith.constant 0 : i32
    return %c0_i32, %c0_i32_0 : i32, i32
  }
  func.func @transform_4(%arg0: i32) -> (i32, i32, i32) {
    %c0_i32 = arith.constant 0 : i32
    %c0_i32_0 = arith.constant 0 : i32
    %c0_i32_1 = arith.constant 0 : i32
    return %arg0, %c0_i32, %c0_i32_0 : i32, i32, i32
  }
  func.func @transform_5(%arg0: i32) -> (i32, i32, i32) {
    %c0_i32 = arith.constant 0 : i32
    %c0_i32_0 = arith.constant 0 : i32
    %c0_i32_1 = arith.constant 0 : i32
    return %arg0, %c0_i32, %c0_i32_0 : i32, i32, i32
  }
  func.func @transform_6(%arg0: i32) -> (i32, i32, i32) {
    %c0_i32 = arith.constant 0 : i32
    %c0_i32_0 = arith.constant 0 : i32
    %c0_i32_1 = arith.constant 0 : i32
    return %arg0, %c0_i32, %c0_i32_0 : i32, i32, i32
  }
  func.func @transform_7(%arg0: i32) -> (i32, i32, i32) {
    %c0_i32 = arith.constant 0 : i32
    %c0_i32_0 = arith.constant 0 : i32
    %c0_i32_1 = arith.constant 0 : i32
    return %arg0, %c0_i32, %c0_i32_0 : i32, i32, i32
  }
  func.func @transform_8(%arg0: i32) -> (i32, i32, i32) {
    %c0_i32 = arith.constant 0 : i32
    %c0_i32_0 = arith.constant 0 : i32
    %c0_i32_1 = arith.constant 0 : i32
    return %arg0, %c0_i32, %c0_i32_0 : i32, i32, i32
  }
  func.func @transform_9(%arg0: i32) -> (i32, i32, i32) {
    %c0_i32 = arith.constant 0 : i32
    %c0_i32_0 = arith.constant 0 : i32
    %c0_i32_1 = arith.constant 0 : i32
    return %arg0, %c0_i32, %c0_i32_0 : i32, i32, i32
  }
  func.func @transform_10(%arg0: i32) -> (i32, i32, i32) {
    %c0_i32 = arith.constant 0 : i32
    %c0_i32_0 = arith.constant 0 : i32
    %c0_i32_1 = arith.constant 0 : i32
    return %arg0, %c0_i32, %c0_i32_0 : i32, i32, i32
  }
  func.func @transform_11(%arg0: i32) -> (i32, i32, i32) {
    %c0_i32 = arith.constant 0 : i32
    %c0_i32_0 = arith.constant 0 : i32
    %c0_i32_1 = arith.constant 0 : i32
    return %arg0, %c0_i32, %c0_i32_0 : i32, i32, i32
  }
  func.func @transform_12(%arg0: i32) -> (i32, i32, i32) {
    %c0_i32 = arith.constant 0 : i32
    %c0_i32_0 = arith.constant 0 : i32
    %c0_i32_1 = arith.constant 0 : i32
    return %arg0, %c0_i32, %c0_i32_0 : i32, i32, i32
  }
  func.func @transform_13(%arg0: i32) -> (i32, i32, i32) {
    %c0_i32 = arith.constant 0 : i32
    %c0_i32_0 = arith.constant 0 : i32
    %c0_i32_1 = arith.constant 0 : i32
    return %arg0, %c0_i32, %c0_i32_0 : i32, i32, i32
  }
  func.func @transform_14(%arg0: i32) -> (i32, i32, i32) {
    %c0_i32 = arith.constant 0 : i32
    %c0_i32_0 = arith.constant 0 : i32
    %c0_i32_1 = arith.constant 0 : i32
    return %arg0, %c0_i32, %c0_i32_0 : i32, i32, i32
  }
  func.func @transform_15(%arg0: i32) -> (i32, i32) {
    %c0_i32 = arith.constant 0 : i32
    %c0_i32_0 = arith.constant 0 : i32
    %c0_i32_1 = arith.constant 0 : i32
    return %c0_i32, %c0_i32_0 : i32, i32
  }
}

</mosaic_0001>

<llo_original>
// kernel: tpu_custom_call.1
$region0: #{tpu_custom_call.1}
  #allocation0 [shape = 'u32[]', space=smem, size = 0x4, offset = 0x4, fixed_abs, tag = 'smem constant byte address 0x4 - core index']
  #allocation1 [shape = 'u32[72,128]{1,0:T(1,128)}', space=vmem, size = 0x9000, scoped, tag = 'internal scratch']
  #allocation2 [shape = 'f32[32,128]{1,0:T(8,128)}', space=vmem, size = 0x4000, scoped, tag = 'scratch operand']
  %s0 = inlined_call_operand.hbm [shape: f32[32,128], index: 0, kind: input, shape index: {}]
  %s1 = inlined_call_operand.hbm [shape: bf16[128,128], index: 1, kind: input, shape index: {}]
  %s2 = inlined_call_operand.hbm [shape: f32[32,128], index: 2, kind: input, shape index: {}]
  %s3 = inlined_call_operand.hbm [shape: bf16[128,128], index: 3, kind: input, shape index: {}]
  %s4 = inlined_call_operand.vmem [shape: f32[1,1,128], index: 4, kind: input, shape index: {}]
  %s5 = inlined_call_operand.vmem [shape: f32[1,1,128], index: 5, kind: input, shape index: {}]
  %s6 = inlined_call_operand.hbm [shape: bf16[1,128,384], index: 6, kind: input, shape index: {}]
  %s7 = inlined_call_operand.hbm [shape: bf16[1,128,128], index: 7, kind: input, shape index: {}]
  %s8 = inlined_call_operand.vmem [shape: f32[1,1,128], index: 8, kind: input, shape index: {}]
  %s9 = inlined_call_operand.vmem [shape: f32[1,1,128], index: 9, kind: input, shape index: {}]
  %s10 = inlined_call_operand.vmem [shape: f32[1,1,128], index: 10, kind: input, shape index: {}]
  %s11 = inlined_call_operand.hbm [shape: bf16[1,128,512], index: 11, kind: input, shape index: {}]
  %s12 = inlined_call_operand.vmem [shape: f32[1,1,512], index: 12, kind: input, shape index: {}]
  %s13 = inlined_call_operand.hbm [shape: bf16[1,512,128], index: 13, kind: input, shape index: {}]
  %s14 = inlined_call_operand.vmem [shape: f32[1,1,128], index: 14, kind: input, shape index: {}]
  %s15 = inlined_call_operand.hbm [shape: f32[32,128], index: 15, kind: output, shape index: {}]
  %s16 = sld [smem:[#allocation0]]
  $region110: #{tpu_custom_call.1} parent=0
    _
  %s18 = ssub.s32 1, %s16
  %s19 = scalar_select 0, %s18, %s16
  $region1: #{tpu_custom_call.1} parent=0
    #allocation3 [shape = 'u8[16384]{0}', space=vmem, size = 0x4000, scoped, tag = 'input window, operand 0, single buffered']
    #allocation4 [shape = 's32[1]{0}', space=sflag, size = 0x4, scoped, tag = 'scoped memory for tpu_custom_call.1']
    #allocation5 [shape = 's32[1]{0}', space=sflag, size = 0x4, scoped, tag = 'scoped memory for tpu_custom_call.1']
    #allocation6 [shape = 'u8[32768]{0}', space=vmem, size = 0x8000, scoped, tag = 'input window, operand 1, single buffered']
    #allocation7 [shape = 's32[1]{0}', space=sflag, size = 0x4, scoped, tag = 'scoped memory for tpu_custom_call.1']
    #allocation8 [shape = 'u8[16384]{0}', space=vmem, size = 0x4000, scoped, tag = 'input window, operand 2, single buffered']
    #allocation9 [shape = 'u8[32768]{0}', space=vmem, size = 0x8000, scoped, tag = 'input window, operand 3, single buffered']
    #allocation10 [shape = 's32[1]{0}', space=sflag, size = 0x4, scoped, tag = 'scoped memory for tpu_custom_call.1']
    #allocation11 [shape = 'u8[98304]{0}', space=vmem, size = 0x18000, scoped, tag = 'input window, operand 6, single buffered']
    #allocation12 [shape = 'u8[32768]{0}', space=vmem, size = 0x8000, scoped, tag = 'input window, operand 7, single buffered']
    #allocation13 [shape = 's32[1]{0}', space=sflag, size = 0x4, scoped, tag = 'scoped memory for tpu_custom_call.1']
    #allocation14 [shape = 'u8[131072]{0}', space=vmem, size = 0x20000, scoped, tag = 'input window, operand 11, single buffered']
    #allocation15 [shape = 'u8[131072]{0}', space=vmem, size = 0x20000, scoped, tag = 'input window, operand 13, single buffered']
    #allocation16 [shape = 's32[1]{0}', space=sflag, size = 0x4, scoped, tag = 'scoped memory for tpu_custom_call.1']
    #allocation17 [shape = 'u8[16384]{0}', space=vmem, size = 0x4000, scoped, tag = 'output window, operand 0, single buffered']
    %20 = vsyncpa [#allocation4], 0
    %21 = vsyncpa [#allocation7], 0
    %22 = vsyncpa [#allocation10], 0
    %23 = vsyncpa [#allocation13], 0
    %24 = vsyncpa [#allocation16], 0
    %25 = vsyncpa [#allocation5], 0
    // Predicated region
    $region2: #{tpu_custom_call.1} parent=1 // pred_check
      _
    $region3: #{tpu_custom_call.1} parent=1 // pred_check_branch
      %27 = sbr.rel (0) target = $region5
    $region4: #{tpu_custom_call.1} parent=1 // pred_region
      %29 = vsyncadd [#allocation4], 0
      %s30 = sshll.u32 %s0, 4
      %s31 = int_to_ptr.hbm [resolvable:$true] %s30
      %s32 = sshll.u32 [#allocation3], 4
      %s33 = int_to_ptr.vmem [resolvable:$true] %s32
      %38 = dma.hbm_to_vmem [thread:$0]  %s31, 512, %s33, [#allocation4], 128, 128, 8
    $region5: #{tpu_custom_call.1} parent=1 // pred_fallthru
      _
    // Predicated region
    $region6: #{tpu_custom_call.1} parent=1 // pred_check
      _
    $region7: #{tpu_custom_call.1} parent=1 // pred_check_branch
      %40 = sbr.rel (0) target = $region9
    $region8: #{tpu_custom_call.1} parent=1 // pred_region
      %42 = vsyncadd [#allocation7], 0
      %s43 = sshll.u32 %s1, 4
      %s44 = int_to_ptr.hbm [resolvable:$true] %s43
      %s45 = sshll.u32 [#allocation6], 4
      %s46 = int_to_ptr.vmem [resolvable:$true] %s45
      %51 = dma.hbm_to_vmem [thread:$0]  %s44, 1024, %s46, [#allocation7], 64, 64, 4
    $region9: #{tpu_custom_call.1} parent=1 // pred_fallthru
      _
    // Predicated region
    $region10: #{tpu_custom_call.1} parent=1 // pred_check
      _
    $region11: #{tpu_custom_call.1} parent=1 // pred_check_branch
      %53 = sbr.rel (0) target = $region13
    $region12: #{tpu_custom_call.1} parent=1 // pred_region
      %55 = vsyncadd [#allocation7], 0
      %s56 = sshll.u32 %s2, 4
      %s57 = int_to_ptr.hbm [resolvable:$true] %s56
      %s58 = sshll.u32 [#allocation8], 4
      %s59 = int_to_ptr.vmem [resolvable:$true] %s58
      %64 = dma.hbm_to_vmem [thread:$0]  %s57, 512, %s59, [#allocation7], 128, 128, 8
    $region13: #{tpu_custom_call.1} parent=1 // pred_fallthru
      _
    // Predicated region
    $region14: #{tpu_custom_call.1} parent=1 // pred_check
      _
    $region15: #{tpu_custom_call.1} parent=1 // pred_check_branch
      %66 = sbr.rel (0) target = $region17
    $region16: #{tpu_custom_call.1} parent=1 // pred_region
      %68 = vsyncadd [#allocation10], 0
      %s69 = sshll.u32 %s3, 4
      %s70 = int_to_ptr.hbm [resolvable:$true] %s69
      %s71 = sshll.u32 [#allocation9], 4
      %s72 = int_to_ptr.vmem [resolvable:$true] %s71
      %77 = dma.hbm_to_vmem [thread:$0]  %s70, 1024, %s72, [#allocation10], 64, 64, 4
    $region17: #{tpu_custom_call.1} parent=1 // pred_fallthru
      _
    // Predicated region
    $region18: #{tpu_custom_call.1} parent=1 // pred_check
      _
    $region19: #{tpu_custom_call.1} parent=1 // pred_check_branch
      %79 = sbr.rel (0) target = $region21
    $region20: #{tpu_custom_call.1} parent=1 // pred_region
      _
    $region21: #{tpu_custom_call.1} parent=1 // pred_fallthru
      _
    // Predicated region
    $region22: #{tpu_custom_call.1} parent=1 // pred_check
      _
    $region23: #{tpu_custom_call.1} parent=1 // pred_check_branch
      %81 = sbr.rel (0) target = $region25
    $region24: #{tpu_custom_call.1} parent=1 // pred_region
      _
    $region25: #{tpu_custom_call.1} parent=1 // pred_fallthru
      _
    // Predicated region
    $region26: #{tpu_custom_call.1} parent=1 // pred_check
      _
    $region27: #{tpu_custom_call.1} parent=1 // pred_check_branch
      %83 = sbr.rel (0) target = $region29
    $region28: #{tpu_custom_call.1} parent=1 // pred_region
      %85 = vsyncadd [#allocation10], 0
      %s86 = sshll.u32 %s6, 4
      %s87 = int_to_ptr.hbm [resolvable:$true] %s86
      %s88 = sshll.u32 [#allocation11], 4
      %s89 = int_to_ptr.vmem [resolvable:$true] %s88
      %94 = dma.hbm_to_vmem [thread:$0]  %s87, 3072, %s89, [#allocation10], 192, 192, 12
    $region29: #{tpu_custom_call.1} parent=1 // pred_fallthru
      _
    // Predicated region
    $region30: #{tpu_custom_call.1} parent=1 // pred_check
      _
    $region31: #{tpu_custom_call.1} parent=1 // pred_check_branch
      %96 = sbr.rel (0) target = $region33
    $region32: #{tpu_custom_call.1} parent=1 // pred_region
      %98 = vsyncadd [#allocation13], 0
      %s99 = sshll.u32 %s7, 4
      %s100 = int_to_ptr.hbm [resolvable:$true] %s99
      %s101 = sshll.u32 [#allocation12], 4
      %s102 = int_to_ptr.vmem [resolvable:$true] %s101
      %107 = dma.hbm_to_vmem [thread:$0]  %s100, 1024, %s102, [#allocation13], 64, 64, 4
    $region33: #{tpu_custom_call.1} parent=1 // pred_fallthru
      _
    // Predicated region
    $region34: #{tpu_custom_call.1} parent=1 // pred_check
      _
    $region35: #{tpu_custom_call.1} parent=1 // pred_check_branch
      %109 = sbr.rel (0) target = $region37
    $region36: #{tpu_custom_call.1} parent=1 // pred_region
      _
    $region37: #{tpu_custom_call.1} parent=1 // pred_fallthru
      _
    // Predicated region
    $region38: #{tpu_custom_call.1} parent=1 // pred_check
      _
    $region39: #{tpu_custom_call.1} parent=1 // pred_check_branch
      %111 = sbr.rel (0) target = $region41
    $region40: #{tpu_custom_call.1} parent=1 // pred_region
      _
    $region41: #{tpu_custom_call.1} parent=1 // pred_fallthru
      _
    // Predicated region
    $region42: #{tpu_custom_call.1} parent=1 // pred_check
      _
    $region43: #{tpu_custom_call.1} parent=1 // pred_check_branch
      %113 = sbr.rel (0) target = $region45
    $region44: #{tpu_custom_call.1} parent=1 // pred_region
      _
    $region45: #{tpu_custom_call.1} parent=1 // pred_fallthru
      _
    // Predicated region
    $region46: #{tpu_custom_call.1} parent=1 // pred_check
      _
    $region47: #{tpu_custom_call.1} parent=1 // pred_check_branch
      %115 = sbr.rel (0) target = $region49
    $region48: #{tpu_custom_call.1} parent=1 // pred_region
      %117 = vsyncadd [#allocation13], 0
      %s118 = sshll.u32 %s11, 4
      %s119 = int_to_ptr.hbm [resolvable:$true] %s118
      %s120 = sshll.u32 [#allocation14], 4
      %s121 = int_to_ptr.vmem [resolvable:$true] %s120
      %126 = dma.hbm_to_vmem [thread:$0]  %s119, 4096, %s121, [#allocation13], 256, 256, 16
    $region49: #{tpu_custom_call.1} parent=1 // pred_fallthru
      _
    // Predicated region
    $region50: #{tpu_custom_call.1} parent=1 // pred_check
      _
    $region51: #{tpu_custom_call.1} parent=1 // pred_check_branch
      %128 = sbr.rel (0) target = $region53
    $region52: #{tpu_custom_call.1} parent=1 // pred_region
      _
    $region53: #{tpu_custom_call.1} parent=1 // pred_fallthru
      _
    // Predicated region
    $region54: #{tpu_custom_call.1} parent=1 // pred_check
      _
    $region55: #{tpu_custom_call.1} parent=1 // pred_check_branch
      %130 = sbr.rel (0) target = $region57
    $region56: #{tpu_custom_call.1} parent=1 // pred_region
      %132 = vsyncadd [#allocation16], 0
      %s133 = sshll.u32 %s13, 4
      %s134 = int_to_ptr.hbm [resolvable:$true] %s133
      %s135 = sshll.u32 [#allocation15], 4
      %s136 = int_to_ptr.vmem [resolvable:$true] %s135
      %141 = dma.hbm_to_vmem [thread:$0]  %s134, 4096, %s136, [#allocation16], 64, 64, 4
    $region57: #{tpu_custom_call.1} parent=1 // pred_fallthru
      _
    // Predicated region
    $region58: #{tpu_custom_call.1} parent=1 // pred_check
      _
    $region59: #{tpu_custom_call.1} parent=1 // pred_check_branch
      %143 = sbr.rel (0) target = $region61
    $region60: #{tpu_custom_call.1} parent=1 // pred_region
      _
    $region61: #{tpu_custom_call.1} parent=1 // pred_fallthru
      _
    // Predicated region
    $region62: #{tpu_custom_call.1} parent=1 // pred_check
      _
    $region63: #{tpu_custom_call.1} parent=1 // pred_check_branch
      %145 = sbr.rel (0) target = $region65
    $region64: #{tpu_custom_call.1} parent=1 // pred_region
      %147 = dma.done [#allocation4], 512
    $region65: #{tpu_custom_call.1} parent=1 // pred_fallthru
      _
    // Predicated region
    $region66: #{tpu_custom_call.1} parent=1 // pred_check
      _
    $region67: #{tpu_custom_call.1} parent=1 // pred_check_branch
      %149 = sbr.rel (0) target = $region69
    $region68: #{tpu_custom_call.1} parent=1 // pred_region
      %151 = dma.done [#allocation7], 1024
    $region69: #{tpu_custom_call.1} parent=1 // pred_fallthru
      _
    // Predicated region
    $region70: #{tpu_custom_call.1} parent=1 // pred_check
      _
    $region71: #{tpu_custom_call.1} parent=1 // pred_check_branch
      %153 = sbr.rel (0) target = $region73
    $region72: #{tpu_custom_call.1} parent=1 // pred_region
      %155 = dma.done [#allocation7], 512
    $region73: #{tpu_custom_call.1} parent=1 // pred_fallthru
      _
    // Predicated region
    $region74: #{tpu_custom_call.1} parent=1 // pred_check
      _
    $region75: #{tpu_custom_call.1} parent=1 // pred_check_branch
      %157 = sbr.rel (0) target = $region77
    $region76: #{tpu_custom_call.1} parent=1 // pred_region
      %159 = dma.done [#allocation10], 1024
    $region77: #{tpu_custom_call.1} parent=1 // pred_fallthru
      _
    // Predicated region
    $region78: #{tpu_custom_call.1} parent=1 // pred_check
      _
    $region79: #{tpu_custom_call.1} parent=1 // pred_check_branch
      %161 = sbr.rel (0) target = $region81
    $region80: #{tpu_custom_call.1} parent=1 // pred_region
      %163 = dma.done [#allocation10], 3072
    $region81: #{tpu_custom_call.1} parent=1 // pred_fallthru
      _
    // Predicated region
    $region82: #{tpu_custom_call.1} parent=1 // pred_check
      _
    $region83: #{tpu_custom_call.1} parent=1 // pred_check_branch
      %165 = sbr.rel (0) target = $region85
    $region84: #{tpu_custom_call.1} parent=1 // pred_region
      %167 = dma.done [#allocation13], 1024
    $region85: #{tpu_custom_call.1} parent=1 // pred_fallthru
      _
    // Predicated region
    $region86: #{tpu_custom_call.1} parent=1 // pred_check
      _
    $region87: #{tpu_custom_call.1} parent=1 // pred_check_branch
      %169 = sbr.rel (0) target = $region89
    $region88: #{tpu_custom_call.1} parent=1 // pred_region
      %171 = dma.done [#allocation13], 4096
    $region89: #{tpu_custom_call.1} parent=1 // pred_fallthru
      _
    // Predicated region
    $region90: #{tpu_custom_call.1} parent=1 // pred_check
      _
    $region91: #{tpu_custom_call.1} parent=1 // pred_check_branch
      %173 = sbr.rel (0) target = $region93
    $region92: #{tpu_custom_call.1} parent=1 // pred_region
      %175 = dma.done [#allocation16], 4096
    $region93: #{tpu_custom_call.1} parent=1 // pred_fallthru
      _
    %p176 = scmp.eq.s32.totalorder 0, 0
    // Predicated region
    $region94: #{tpu_custom_call.1} parent=1 // pred_check
      %p177 = pneg %p176
    $region95: #{tpu_custom_call.1} parent=1 // pred_check_branch
      %179 = sbr.rel (%p177) target = $region97
    $region96: #{tpu_custom_call.1} parent=1 // pred_region
      %v180 = vld [vmem:[#allocation3] sm:$0xff]
      %v181 = vld [vmem:[#allocation3 + $0x8] sm:$0xff]
      %v182 = vld [vmem:[#allocation3 + $0x10] sm:$0xff]
      %v183 = vld [vmem:[#allocation3 + $0x18] sm:$0xff]
      %184 = vst [vmem:[#allocation2] sm:$0xff] %v180
      %185 = vst [vmem:[#allocation2 + $0x8] sm:$0xff] %v181
      %186 = vst [vmem:[#allocation2 + $0x10] sm:$0xff] %v182
      %187 = vst [vmem:[#allocation2 + $0x18] sm:$0xff] %v183
    $region97: #{tpu_custom_call.1} parent=1 // pred_fallthru
      _
    %v188 = vld [vmem:[#allocation2] sm:$0xff]
    %v189 = vld [vmem:[#allocation2 + $0x8] sm:$0xff]
    %v190 = vld [vmem:[#allocation2 + $0x10] sm:$0xff]
    %v191 = vld [vmem:[#allocation2 + $0x18] sm:$0xff]
    %v192 = vld [vmem:[%s4] sm:$0x1]
    %v193 = vld [vmem:[%s5] sm:$0x1]
    %194 = vadd.xlane.f32.xlu0 %v188
    %v195 = vpop.xlane.xlu0 %194
    %196 = vadd.xlane.f32.xlu0 %v189
    %v197 = vpop.xlane.xlu0 %196
    %198 = vadd.xlane.f32.xlu0 %v190
    %v199 = vpop.xlane.xlu0 %198
    %200 = vadd.xlane.f32.xlu0 %v191
    %v201 = vpop.xlane.xlu0 %200
    %v202 = vrcp.pop 128.0
    %v203 = vmul.f32 128.0, %v202
    %v204 = vsub.f32 1.0, %v203
    %v205 = vmul.f32 %v202, %v204
    %v206 = vadd.f32 %v202, %v205
    %vm207 = vweird.f32 %v202
    %v208 = vsel %vm207, %v202, %v206
    %v209 = vmul.f32 %v195, %v208
    %v210 = vmul.f32 %v197, %v208
    %v211 = vmul.f32 %v199, %v208
    %v212 = vmul.f32 %v201, %v208
    %v213 = vsub.f32 %v188, %v209
    %v214 = vsub.f32 %v189, %v210
    %v215 = vsub.f32 %v190, %v211
    %v216 = vsub.f32 %v191, %v212
    %v217 = vmul.f32 %v213, %v213
    %v218 = vmul.f32 %v214, %v214
    %v219 = vmul.f32 %v215, %v215
    %v220 = vmul.f32 %v216, %v216
    %221 = vadd.xlane.f32.xlu0 %v217
    %v222 = vpop.xlane.xlu0 %221
    %223 = vadd.xlane.f32.xlu0 %v218
    %v224 = vpop.xlane.xlu0 %223
    %225 = vadd.xlane.f32.xlu0 %v219
    %v226 = vpop.xlane.xlu0 %225
    %227 = vadd.xlane.f32.xlu0 %v220
    %v228 = vpop.xlane.xlu0 %227
    %v229 = vmul.f32 %v222, %v208
    %v230 = vmul.f32 %v224, %v208
    %v231 = vmul.f32 %v226, %v208
    %v232 = vmul.f32 %v228, %v208
    %v233 = vadd.f32 %v229, 1e-05
    %v234 = vadd.f32 %v230, 1e-05
    %v235 = vadd.f32 %v231, 1e-05
    %v236 = vadd.f32 %v232, 1e-05
    %v237 = vrsqrt.pop %v233
    %v238 = vmul.f32 %v237, %v233
    %v239 = vmul.f32 %v238, %v237
    %v240 = vmul.f32 0.5, %v239
    %v241 = vsub.f32 1.5, %v240
    %v242 = vmul.f32 %v237, %v241
    %vm243 = vweird.f32 %v233
    %vm244 = vweird.f32 %v237
    %vm245 = vmor %vm243, %vm244
    %v246 = vsel %vm245, %v237, %v242
    %v247 = vrsqrt.pop %v234
    %v248 = vmul.f32 %v247, %v234
    %v249 = vmul.f32 %v248, %v247
    %v250 = vmul.f32 0.5, %v249
    %v251 = vsub.f32 1.5, %v250
    %v252 = vmul.f32 %v247, %v251
    %vm253 = vweird.f32 %v234
    %vm254 = vweird.f32 %v247
    %vm255 = vmor %vm253, %vm254
    %v256 = vsel %vm255, %v247, %v252
    %v257 = vrsqrt.pop %v235
    %v258 = vmul.f32 %v257, %v235
    %v259 = vmul.f32 %v258, %v257
    %v260 = vmul.f32 0.5, %v259
    %v261 = vsub.f32 1.5, %v260
    %v262 = vmul.f32 %v257, %v261
    %vm263 = vweird.f32 %v235
    %vm264 = vweird.f32 %v257
    %vm265 = vmor %vm263, %vm264
    %v266 = vsel %vm265, %v257, %v262
    %v267 = vrsqrt.pop %v236
    %v268 = vmul.f32 %v267, %v236
    %v269 = vmul.f32 %v268, %v267
    %v270 = vmul.f32 0.5, %v269
    %v271 = vsub.f32 1.5, %v270
    %v272 = vmul.f32 %v267, %v271
    %vm273 = vweird.f32 %v236
    %vm274 = vweird.f32 %v267
    %vm275 = vmor %vm273, %vm274
    %v276 = vsel %vm275, %v267, %v272
    %v277 = vmul.f32 %v213, %v246
    %v278 = vmul.f32 %v214, %v256
    %v279 = vmul.f32 %v215, %v266
    %v280 = vmul.f32 %v216, %v276
    %v282 = vperm.slane %v192, 0
    %v284 = vmul.f32 %v277, %v282
    %v285 = vmul.f32 %v278, %v282
    %v286 = vmul.f32 %v279, %v282
    %v287 = vmul.f32 %v280, %v282
    %v289 = vperm.slane %v193, 0
    %v291 = vadd.f32 %v284, %v289
    %v292 = vadd.f32 %v285, %v289
    %v293 = vadd.f32 %v286, %v289
    %v294 = vadd.f32 %v287, %v289
    %v295 = vpack.c.bf16 %v292, %v291
    %v296 = vpack.c.bf16 %v294, %v293
    %v297 = vld [vmem:[#allocation11] sm:$0xff]
    %v298 = vld [vmem:[#allocation11 + $0x8] sm:$0xf]
    %v299 = vld [vmem:[#allocation11 + $0xc] sm:$0xff]
    %v300 = vld [vmem:[#allocation11 + $0x14] sm:$0xf]
    %v301 = vld [vmem:[#allocation11 + $0x18] sm:$0xff]
    %v302 = vld [vmem:[#allocation11 + $0x20] sm:$0xf]
    %v303 = vld [vmem:[#allocation11 + $0x24] sm:$0xff]
    %v304 = vld [vmem:[#allocation11 + $0x2c] sm:$0xf]
    %v305 = vld [vmem:[#allocation11 + $0x30] sm:$0xff]
    %v306 = vld [vmem:[#allocation11 + $0x38] sm:$0xf]
    %v307 = vld [vmem:[#allocation11 + $0x3c] sm:$0xff]
    %v308 = vld [vmem:[#allocation11 + $0x44] sm:$0xf]
    %v309 = vld [vmem:[#allocation11 + $0x48] sm:$0xff]
    %v310 = vld [vmem:[#allocation11 + $0x50] sm:$0xf]
    %v311 = vld [vmem:[#allocation11 + $0x54] sm:$0xff]
    %v312 = vld [vmem:[#allocation11 + $0x5c] sm:$0xf]
    %v313 = vld [vmem:[#allocation11 + $0x60] sm:$0xff]
    %v314 = vld [vmem:[#allocation11 + $0x68] sm:$0xf]
    %v315 = vld [vmem:[#allocation11 + $0x6c] sm:$0xff]
    %v316 = vld [vmem:[#allocation11 + $0x74] sm:$0xf]
    %v317 = vld [vmem:[#allocation11 + $0x78] sm:$0xff]
    %v318 = vld [vmem:[#allocation11 + $0x80] sm:$0xf]
    %v319 = vld [vmem:[#allocation11 + $0x84] sm:$0xff]
    %v320 = vld [vmem:[#allocation11 + $0x8c] sm:$0xf]
    %v321 = vld [vmem:[#allocation11 + $0x90] sm:$0xff]
    %v322 = vld [vmem:[#allocation11 + $0x98] sm:$0xf]
    %v323 = vld [vmem:[#allocation11 + $0x9c] sm:$0xff]
    %v324 = vld [vmem:[#allocation11 + $0xa4] sm:$0xf]
    %v325 = vld [vmem:[#allocation11 + $0xa8] sm:$0xff]
    %v326 = vld [vmem:[#allocation11 + $0xb0] sm:$0xf]
    %v327 = vld [vmem:[#allocation11 + $0xb4] sm:$0xff]
    %v328 = vld [vmem:[#allocation11 + $0xbc] sm:$0xf]
    %v361 = vunpack.c.l.b16 %v297
    %v362 = vunpack.c.h.b16 %v297
    %v363 = vunpack.c.l.b16 %v298
    %v364 = vunpack.c.l.b16 %v299
    %v365 = vunpack.c.h.b16 %v299
    %v366 = vunpack.c.l.b16 %v300
    %v367 = vunpack.c.l.b16 %v301
    %v368 = vunpack.c.h.b16 %v301
    %v369 = vunpack.c.l.b16 %v302
    %v370 = vunpack.c.l.b16 %v303
    %v371 = vunpack.c.h.b16 %v303
    %v372 = vunpack.c.l.b16 %v304
    %v373 = vunpack.c.l.b16 %v305
    %v374 = vunpack.c.h.b16 %v305
    %v375 = vunpack.c.l.b16 %v306
    %v376 = vunpack.c.l.b16 %v307
    %v377 = vunpack.c.h.b16 %v307
    %v378 = vunpack.c.l.b16 %v308
    %v379 = vunpack.c.l.b16 %v309
    %v380 = vunpack.c.h.b16 %v309
    %v381 = vunpack.c.l.b16 %v310
    %v382 = vunpack.c.l.b16 %v311
    %v383 = vunpack.c.h.b16 %v311
    %v384 = vunpack.c.l.b16 %v312
    %v385 = vunpack.c.l.b16 %v313
    %v386 = vunpack.c.h.b16 %v313
    %v387 = vunpack.c.l.b16 %v314
    %v388 = vunpack.c.l.b16 %v315
    %v389 = vunpack.c.h.b16 %v315
    %v390 = vunpack.c.l.b16 %v316
    %v391 = vunpack.c.l.b16 %v317
    %v392 = vunpack.c.h.b16 %v317
    %v393 = vunpack.c.l.b16 %v318
    %v394 = vunpack.c.l.b16 %v319
    %v395 = vunpack.c.h.b16 %v319
    %v396 = vunpack.c.l.b16 %v320
    %v397 = vunpack.c.l.b16 %v321
    %v398 = vunpack.c.h.b16 %v321
    %v399 = vunpack.c.l.b16 %v322
    %v400 = vunpack.c.l.b16 %v323
    %v401 = vunpack.c.h.b16 %v323
    %v402 = vunpack.c.l.b16 %v324
    %v403 = vunpack.c.l.b16 %v325
    %v404 = vunpack.c.h.b16 %v325
    %v405 = vunpack.c.l.b16 %v326
    %v406 = vunpack.c.l.b16 %v327
    %v407 = vunpack.c.h.b16 %v327
    %v408 = vunpack.c.l.b16 %v328
    %v409 = vpack.c.b16 %v364, %v361
    %v410 = vpack.c.b16 %v365, %v362
    %v411 = vpack.c.b16 %v366, %v363
    %v412 = vpack.c.b16 %v370, %v367
    %v413 = vpack.c.b16 %v371, %v368
    %v414 = vpack.c.b16 %v372, %v369
    %v415 = vpack.c.b16 %v376, %v373
    %v416 = vpack.c.b16 %v377, %v374
    %v417 = vpack.c.b16 %v378, %v375
    %v418 = vpack.c.b16 %v382, %v379
    %v419 = vpack.c.b16 %v383, %v380
    %v420 = vpack.c.b16 %v384, %v381
    %v421 = vpack.c.b16 %v388, %v385
    %v422 = vpack.c.b16 %v389, %v386
    %v423 = vpack.c.b16 %v390, %v387
    %v424 = vpack.c.b16 %v394, %v391
    %v425 = vpack.c.b16 %v395, %v392
    %v426 = vpack.c.b16 %v396, %v393
    %v427 = vpack.c.b16 %v400, %v397
    %v428 = vpack.c.b16 %v401, %v398
    %v429 = vpack.c.b16 %v402, %v399
    %v430 = vpack.c.b16 %v406, %v403
    %v431 = vpack.c.b16 %v407, %v404
    %v432 = vpack.c.b16 %v408, %v405
    %457 = vmatpush.bf16.msra.mxu0 %v430
    %458 = vmatpush.bf16.msra.mxu0 %v427
    %459 = vmatpush.bf16.msra.mxu0 %v424
    %460 = vmatpush.bf16.msra.mxu0 %v421
    %461 = vmatpush.bf16.msra.mxu0 %v418
    %462 = vmatpush.bf16.msra.mxu0 %v415
    %463 = vmatpush.bf16.msra.mxu0 %v412
    %464 = vmatpush.bf16.msra.mxu0 %v409
    %465 = vmatmul.bf16.gmra.mxu0 %v295
    %v466 = vpop.f32.mrf.mxu0
    %v467 = vadd.f32 0.0, %v466
    %v468 = vpop.f32.mrf.mxu0
    %v469 = vadd.f32 0.0, %v468
    %470 = vmatmul.bf16.gmra.mxu0 %v296
    %v471 = vpop.f32.mrf.mxu0
    %v472 = vadd.f32 0.0, %v471
    %v473 = vpop.f32.mrf.mxu0
    %v474 = vadd.f32 0.0, %v473
    %475 = vdwg.mxu0
    %476 = vmatpush.bf16.msra.mxu0 %v431
    %477 = vmatpush.bf16.msra.mxu0 %v428
    %478 = vmatpush.bf16.msra.mxu0 %v425
    %479 = vmatpush.bf16.msra.mxu0 %v422
    %480 = vmatpush.bf16.msra.mxu0 %v419
    %481 = vmatpush.bf16.msra.mxu0 %v416
    %482 = vmatpush.bf16.msra.mxu0 %v413
    %483 = vmatpush.bf16.msra.mxu0 %v410
    %484 = vmatmul.bf16.gmra.mxu0 %v295
    %v485 = vpop.f32.mrf.mxu0
    %v486 = vadd.f32 0.0, %v485
    %v487 = vpop.f32.mrf.mxu0
    %v488 = vadd.f32 0.0, %v487
    %489 = vmatmul.bf16.gmra.mxu0 %v296
    %v490 = vpop.f32.mrf.mxu0
    %v491 = vadd.f32 0.0, %v490
    %v492 = vpop.f32.mrf.mxu0
    %v493 = vadd.f32 0.0, %v492
    %494 = vdwg.mxu0
    %495 = vmatpush.bf16.msra.mxu0 %v432
    %496 = vmatpush.bf16.msra.mxu0 %v429
    %497 = vmatpush.bf16.msra.mxu0 %v426
    %498 = vmatpush.bf16.msra.mxu0 %v423
    %499 = vmatpush.bf16.msra.mxu0 %v420
    %500 = vmatpush.bf16.msra.mxu0 %v417
    %501 = vmatpush.bf16.msra.mxu0 %v414
    %502 = vmatpush.bf16.msra.mxu0 %v411
    %503 = vmatmul.bf16.gmra.mxu0 %v295
    %v504 = vpop.f32.mrf.mxu0
    %v505 = vadd.f32 0.0, %v504
    %v506 = vpop.f32.mrf.mxu0
    %v507 = vadd.f32 0.0, %v506
    %508 = vmatmul.bf16.gmra.mxu0 %v296
    %v509 = vpop.f32.mrf.mxu0
    %v510 = vadd.f32 0.0, %v509
    %v511 = vpop.f32.mrf.mxu0
    %v512 = vadd.f32 0.0, %v511
    %513 = vdwg.mxu0
    %v514 = vpack.c.bf16 %v469, %v467
    %v515 = vpack.c.bf16 %v474, %v472
    %v516 = vpack.c.bf16 %v486, %v486
    %v517 = vpack.c.bf16 %v488, %v488
    %v518 = vpack.c.bf16 %v491, %v491
    %v519 = vpack.c.bf16 %v493, %v493
    %v520 = vpack.c.bf16 %v505, %v505
    %v521 = vpack.c.bf16 %v507, %v507
    %v522 = vpack.c.bf16 %v510, %v510
    %v523 = vpack.c.bf16 %v512, %v512
    %v524 = vld [vmem:[#allocation6] sm:$0xf]
    %v525 = vld [vmem:[#allocation6 + $0x4] sm:$0xf]
    %v526 = vld [vmem:[#allocation6 + $0x8] sm:$0xf]
    %v527 = vld [vmem:[#allocation6 + $0xc] sm:$0xf]
    %v528 = vld [vmem:[#allocation6 + $0x10] sm:$0xf]
    %v529 = vld [vmem:[#allocation6 + $0x14] sm:$0xf]
    %v530 = vld [vmem:[#allocation6 + $0x18] sm:$0xf]
    %v531 = vld [vmem:[#allocation6 + $0x1c] sm:$0xf]
    %v532 = vld [vmem:[#allocation6 + $0x20] sm:$0xf]
    %v533 = vld [vmem:[#allocation6 + $0x24] sm:$0xf]
    %v534 = vld [vmem:[#allocation6 + $0x28] sm:$0xf]
    %v535 = vld [vmem:[#allocation6 + $0x2c] sm:$0xf]
    %v536 = vld [vmem:[#allocation6 + $0x30] sm:$0xf]
    %v537 = vld [vmem:[#allocation6 + $0x34] sm:$0xf]
    %v538 = vld [vmem:[#allocation6 + $0x38] sm:$0xf]
    %v539 = vld [vmem:[#allocation6 + $0x3c] sm:$0xf]
    %v544 = vunpack.c.l.b16 %v516
    %v545 = vunpack.c.l.b16 %v517
    %v546 = vunpack.c.l.b16 %v518
    %v547 = vunpack.c.l.b16 %v519
    %v548 = vpack.c.b16 %v545, %v544
    %v549 = vpack.c.b16 %v547, %v546
    %v552 = vunpack.c.l.bf16 %v548
    %v553 = vunpack.c.h.bf16 %v548
    %v554 = vunpack.c.l.bf16 %v549
    %v555 = vunpack.c.h.bf16 %v549
    %v556 = vunpack.c.l.bf16 %v524
    %v557 = vunpack.c.l.bf16 %v525
    %v558 = vunpack.c.l.bf16 %v526
    %v559 = vunpack.c.l.bf16 %v527
    %v560 = vunpack.c.l.bf16 %v528
    %v561 = vunpack.c.l.bf16 %v529
    %v562 = vunpack.c.l.bf16 %v530
    %v563 = vunpack.c.l.bf16 %v531
    %v564 = vunpack.c.l.bf16 %v532
    %v565 = vunpack.c.l.bf16 %v533
    %v566 = vunpack.c.l.bf16 %v534
    %v567 = vunpack.c.l.bf16 %v535
    %v568 = vunpack.c.l.bf16 %v536
    %v569 = vunpack.c.l.bf16 %v537
    %v570 = vunpack.c.l.bf16 %v538
    %v571 = vunpack.c.l.bf16 %v539
    %v572 = vmul.f32 %v552, %v556
    %v573 = vmul.f32 %v553, %v557
    %v574 = vmul.f32 %v554, %v558
    %v575 = vmul.f32 %v555, %v559
    %v576 = vmul.f32 %v552, %v560
    %v577 = vmul.f32 %v553, %v561
    %v578 = vmul.f32 %v554, %v562
    %v579 = vmul.f32 %v555, %v563
    %v580 = vmul.f32 %v552, %v564
    %v581 = vmul.f32 %v553, %v565
    %v582 = vmul.f32 %v554, %v566
    %v583 = vmul.f32 %v555, %v567
    %v584 = vmul.f32 %v552, %v568
    %v585 = vmul.f32 %v553, %v569
    %v586 = vmul.f32 %v554, %v570
    %v587 = vmul.f32 %v555, %v571
    %v588 = vpack.c.bf16 %v573, %v572
    %v589 = vpack.c.bf16 %v575, %v574
    %v590 = vpack.c.bf16 %v577, %v576
    %v591 = vpack.c.bf16 %v579, %v578
    %v592 = vpack.c.bf16 %v581, %v580
    %v593 = vpack.c.bf16 %v583, %v582
    %v594 = vpack.c.bf16 %v585, %v584
    %v595 = vpack.c.bf16 %v587, %v586
    %v596 = vld [vmem:[#allocation8] sm:$0xff]
    %v597 = vld [vmem:[#allocation8 + $0x8] sm:$0xff]
    %v598 = vld [vmem:[#allocation8 + $0x10] sm:$0xff]
    %v599 = vld [vmem:[#allocation8 + $0x18] sm:$0xff]
    %600 = vmatpush.bf16.xpose.msra.mxu0 %v595
    %601 = vmatpush.bf16.xpose.msra.mxu0 %v594
    %602 = vmatpush.bf16.xpose.msra.mxu0 %v593
    %603 = vmatpush.bf16.xpose.msra.mxu0 %v592
    %604 = vmatpush.bf16.xpose.msra.mxu0 %v591
    %605 = vmatpush.bf16.xpose.msra.mxu0 %v590
    %606 = vmatpush.bf16.xpose.msra.mxu0 %v589
    %607 = vmatpush.bf16.xpose.msra.mxu0 %v588
    %608 = vmatmul.bf16.gmra.mxu0 %v514
    %v609 = vpop.f32.mrf.mxu0
    %v610 = vadd.f32 %v596, %v609
    %v611 = vpop.f32.mrf.mxu0
    %v612 = vadd.f32 %v597, %v611
    %613 = vmatmul.bf16.gmra.mxu0 %v515
    %v614 = vpop.f32.mrf.mxu0
    %v615 = vadd.f32 %v598, %v614
    %v616 = vpop.f32.mrf.mxu0
    %v617 = vadd.f32 %v599, %v616
    %618 = vdwg.mxu0
    %619 = vmax.xlane.f32.xlu0 %v610
    %v620 = vpop.xlane.xlu0 %619
    %621 = vmax.xlane.f32.xlu0 %v612
    %v622 = vpop.xlane.xlu0 %621
    %623 = vmax.xlane.f32.xlu0 %v615
    %v624 = vpop.xlane.xlu0 %623
    %625 = vmax.xlane.f32.xlu0 %v617
    %v626 = vpop.xlane.xlu0 %625
    %v627 = vsub.f32 %v610, %v620
    %v628 = vsub.f32 %v612, %v622
    %v629 = vsub.f32 %v615, %v624
    %v630 = vsub.f32 %v617, %v626
    %v631 = vmul.f32 %v627, 1.442695
    %v632 = vpow.pop %v631
    %v633 = vmul.f32 %v628, 1.442695
    %v634 = vpow.pop %v633
    %v635 = vmul.f32 %v629, 1.442695
    %v636 = vpow.pop %v635
    %v637 = vmul.f32 %v630, 1.442695
    %v638 = vpow.pop %v637
    %v639 = vpack.c.bf16 %v634, %v632
    %v640 = vpack.c.bf16 %v638, %v636
    %v641 = vld [vmem:[#allocation9] sm:$0xf]
    %v642 = vld [vmem:[#allocation9 + $0x4] sm:$0xf]
    %v643 = vld [vmem:[#allocation9 + $0x8] sm:$0xf]
    %v644 = vld [vmem:[#allocation9 + $0xc] sm:$0xf]
    %v645 = vld [vmem:[#allocation9 + $0x10] sm:$0xf]
    %v646 = vld [vmem:[#allocation9 + $0x14] sm:$0xf]
    %v647 = vld [vmem:[#allocation9 + $0x18] sm:$0xf]
    %v648 = vld [vmem:[#allocation9 + $0x1c] sm:$0xf]
    %v649 = vld [vmem:[#allocation9 + $0x20] sm:$0xf]
    %v650 = vld [vmem:[#allocation9 + $0x24] sm:$0xf]
    %v651 = vld [vmem:[#allocation9 + $0x28] sm:$0xf]
    %v652 = vld [vmem:[#allocation9 + $0x2c] sm:$0xf]
    %v653 = vld [vmem:[#allocation9 + $0x30] sm:$0xf]
    %v654 = vld [vmem:[#allocation9 + $0x34] sm:$0xf]
    %v655 = vld [vmem:[#allocation9 + $0x38] sm:$0xf]
    %v656 = vld [vmem:[#allocation9 + $0x3c] sm:$0xf]
    %v673 = vunpack.c.l.b16 %v641
    %v674 = vunpack.c.l.b16 %v642
    %v675 = vunpack.c.l.b16 %v643
    %v676 = vunpack.c.l.b16 %v644
    %v677 = vunpack.c.l.b16 %v645
    %v678 = vunpack.c.l.b16 %v646
    %v679 = vunpack.c.l.b16 %v647
    %v680 = vunpack.c.l.b16 %v648
    %v681 = vunpack.c.l.b16 %v649
    %v682 = vunpack.c.l.b16 %v650
    %v683 = vunpack.c.l.b16 %v651
    %v684 = vunpack.c.l.b16 %v652
    %v685 = vunpack.c.l.b16 %v653
    %v686 = vunpack.c.l.b16 %v654
    %v687 = vunpack.c.l.b16 %v655
    %v688 = vunpack.c.l.b16 %v656
    %v689 = vpack.c.b16 %v674, %v673
    %v690 = vpack.c.b16 %v676, %v675
    %v691 = vpack.c.b16 %v678, %v677
    %v692 = vpack.c.b16 %v680, %v679
    %v693 = vpack.c.b16 %v682, %v681
    %v694 = vpack.c.b16 %v684, %v683
    %v695 = vpack.c.b16 %v686, %v685
    %v696 = vpack.c.b16 %v688, %v687
    %705 = vmatpush.bf16.msra.mxu0 %v696
    %706 = vmatpush.bf16.msra.mxu0 %v695
    %707 = vmatpush.bf16.msra.mxu0 %v694
    %708 = vmatpush.bf16.msra.mxu0 %v693
    %709 = vmatpush.bf16.msra.mxu0 %v692
    %710 = vmatpush.bf16.msra.mxu0 %v691
    %711 = vmatpush.bf16.msra.mxu0 %v690
    %712 = vmatpush.bf16.msra.mxu0 %v689
    %713 = vmatmul.bf16.gmra.mxu0 %v639
    %v714 = vpop.f32.mrf.mxu0
    %v715 = vadd.f32 1e-30, %v714
    %v716 = vpop.f32.mrf.mxu0
    %v717 = vadd.f32 1e-30, %v716
    %718 = vmatmul.bf16.gmra.mxu0 %v640
    %v719 = vpop.f32.mrf.mxu0
    %v720 = vadd.f32 1e-30, %v719
    %v721 = vpop.f32.mrf.mxu0
    %v722 = vadd.f32 1e-30, %v721
    %723 = vdwg.mxu0
    %v724 = vrcp.pop %v715
    %v725 = vrcp.pop %v717
    %v726 = vrcp.pop %v720
    %v727 = vrcp.pop %v722
    %v728 = vmul.f32 %v632, %v724
    %v729 = vmul.f32 %v634, %v725
    %v730 = vmul.f32 %v636, %v726
    %v731 = vmul.f32 %v638, %v727
    %v732 = vpack.c.bf16 %v729, %v728
    %v733 = vpack.c.bf16 %v731, %v730
    %v738 = vunpack.c.l.b16 %v520
    %v739 = vunpack.c.l.b16 %v521
    %v740 = vunpack.c.l.b16 %v522
    %v741 = vunpack.c.l.b16 %v523
    %v742 = vpack.c.b16 %v739, %v738
    %v743 = vpack.c.b16 %v741, %v740
    %v746 = vunpack.c.l.bf16 %v742
    %v747 = vunpack.c.h.bf16 %v742
    %v748 = vunpack.c.l.bf16 %v743
    %v749 = vunpack.c.h.bf16 %v743
    %v750 = vmul.f32 %v746, %v556
    %v751 = vmul.f32 %v747, %v557
    %v752 = vmul.f32 %v748, %v558
    %v753 = vmul.f32 %v749, %v559
    %v754 = vmul.f32 %v746, %v560
    %v755 = vmul.f32 %v747, %v561
    %v756 = vmul.f32 %v748, %v562
    %v757 = vmul.f32 %v749, %v563
    %v758 = vmul.f32 %v746, %v564
    %v759 = vmul.f32 %v747, %v565
    %v760 = vmul.f32 %v748, %v566
    %v761 = vmul.f32 %v749, %v567
    %v762 = vmul.f32 %v746, %v568
    %v763 = vmul.f32 %v747, %v569
    %v764 = vmul.f32 %v748, %v570
    %v765 = vmul.f32 %v749, %v571
    %v766 = vpack.c.bf16 %v751, %v750
    %v767 = vpack.c.bf16 %v753, %v752
    %v768 = vpack.c.bf16 %v755, %v754
    %v769 = vpack.c.bf16 %v757, %v756
    %v770 = vpack.c.bf16 %v759, %v758
    %v771 = vpack.c.bf16 %v761, %v760
    %v772 = vpack.c.bf16 %v763, %v762
    %v773 = vpack.c.bf16 %v765, %v764
    %774 = vmatpush.bf16.msra.mxu0 %v773
    %775 = vmatpush.bf16.msra.mxu0 %v772
    %776 = vmatpush.bf16.msra.mxu0 %v771
    %777 = vmatpush.bf16.msra.mxu0 %v770
    %778 = vmatpush.bf16.msra.mxu0 %v769
    %779 = vmatpush.bf16.msra.mxu0 %v768
    %780 = vmatpush.bf16.msra.mxu0 %v767
    %781 = vmatpush.bf16.msra.mxu0 %v766
    %782 = vmatmul.bf16.gmra.mxu0 %v732
    %v783 = vpop.f32.mrf.mxu0
    %v784 = vadd.f32 0.0, %v783
    %v785 = vpop.f32.mrf.mxu0
    %v786 = vadd.f32 0.0, %v785
    %787 = vmatmul.bf16.gmra.mxu0 %v733
    %v788 = vpop.f32.mrf.mxu0
    %v789 = vadd.f32 0.0, %v788
    %v790 = vpop.f32.mrf.mxu0
    %v791 = vadd.f32 0.0, %v790
    %792 = vdwg.mxu0
    %v793 = vpack.c.bf16 %v786, %v784
    %v794 = vpack.c.bf16 %v791, %v789
    %v795 = vld [vmem:[#allocation12] sm:$0xf]
    %v796 = vld [vmem:[#allocation12 + $0x4] sm:$0xf]
    %v797 = vld [vmem:[#allocation12 + $0x8] sm:$0xf]
    %v798 = vld [vmem:[#allocation12 + $0xc] sm:$0xf]
    %v799 = vld [vmem:[#allocation12 + $0x10] sm:$0xf]
    %v800 = vld [vmem:[#allocation12 + $0x14] sm:$0xf]
    %v801 = vld [vmem:[#allocation12 + $0x18] sm:$0xf]
    %v802 = vld [vmem:[#allocation12 + $0x1c] sm:$0xf]
    %v803 = vld [vmem:[#allocation12 + $0x20] sm:$0xf]
    %v804 = vld [vmem:[#allocation12 + $0x24] sm:$0xf]
    %v805 = vld [vmem:[#allocation12 + $0x28] sm:$0xf]
    %v806 = vld [vmem:[#allocation12 + $0x2c] sm:$0xf]
    %v807 = vld [vmem:[#allocation12 + $0x30] sm:$0xf]
    %v808 = vld [vmem:[#allocation12 + $0x34] sm:$0xf]
    %v809 = vld [vmem:[#allocation12 + $0x38] sm:$0xf]
    %v810 = vld [vmem:[#allocation12 + $0x3c] sm:$0xf]
    %v811 = vld [vmem:[%s8] sm:$0x1]
    %v813 = vperm.slane %v811, 0
    %v831 = vunpack.c.l.b16 %v795
    %v832 = vunpack.c.l.b16 %v796
    %v833 = vunpack.c.l.b16 %v797
    %v834 = vunpack.c.l.b16 %v798
    %v835 = vunpack.c.l.b16 %v799
    %v836 = vunpack.c.l.b16 %v800
    %v837 = vunpack.c.l.b16 %v801
    %v838 = vunpack.c.l.b16 %v802
    %v839 = vunpack.c.l.b16 %v803
    %v840 = vunpack.c.l.b16 %v804
    %v841 = vunpack.c.l.b16 %v805
    %v842 = vunpack.c.l.b16 %v806
    %v843 = vunpack.c.l.b16 %v807
    %v844 = vunpack.c.l.b16 %v808
    %v845 = vunpack.c.l.b16 %v809
    %v846 = vunpack.c.l.b16 %v810
    %v847 = vpack.c.b16 %v832, %v831
    %v848 = vpack.c.b16 %v834, %v833
    %v849 = vpack.c.b16 %v836, %v835
    %v850 = vpack.c.b16 %v838, %v837
    %v851 = vpack.c.b16 %v840, %v839
    %v852 = vpack.c.b16 %v842, %v841
    %v853 = vpack.c.b16 %v844, %v843
    %v854 = vpack.c.b16 %v846, %v845
    %863 = vmatpush.bf16.msra.mxu0 %v854
    %864 = vmatpush.bf16.msra.mxu0 %v853
    %865 = vmatpush.bf16.msra.mxu0 %v852
    %866 = vmatpush.bf16.msra.mxu0 %v851
    %867 = vmatpush.bf16.msra.mxu0 %v850
    %868 = vmatpush.bf16.msra.mxu0 %v849
    %869 = vmatpush.bf16.msra.mxu0 %v848
    %870 = vmatpush.bf16.msra.mxu0 %v847
    %871 = vmatmul.bf16.gmra.mxu0 %v793
    %v872 = vpop.f32.mrf.mxu0
    %v873 = vadd.f32 %v813, %v872
    %v874 = vpop.f32.mrf.mxu0
    %v875 = vadd.f32 %v813, %v874
    %876 = vmatmul.bf16.gmra.mxu0 %v794
    %v877 = vpop.f32.mrf.mxu0
    %v878 = vadd.f32 %v813, %v877
    %v879 = vpop.f32.mrf.mxu0
    %v880 = vadd.f32 %v813, %v879
    %881 = vdwg.mxu0
    %v882 = vadd.f32 %v188, %v873
    %v883 = vadd.f32 %v189, %v875
    %v884 = vadd.f32 %v190, %v878
    %v885 = vadd.f32 %v191, %v880
    %v886 = vld [vmem:[%s9] sm:$0x1]
    %v887 = vld [vmem:[%s10] sm:$0x1]
    %888 = vadd.xlane.f32.xlu0 %v882
    %v889 = vpop.xlane.xlu0 %888
    %890 = vadd.xlane.f32.xlu0 %v883
    %v891 = vpop.xlane.xlu0 %890
    %892 = vadd.xlane.f32.xlu0 %v884
    %v893 = vpop.xlane.xlu0 %892
    %894 = vadd.xlane.f32.xlu0 %v885
    %v895 = vpop.xlane.xlu0 %894
    %v896 = vmul.f32 %v889, %v208
    %v897 = vmul.f32 %v891, %v208
    %v898 = vmul.f32 %v893, %v208
    %v899 = vmul.f32 %v895, %v208
    %v900 = vsub.f32 %v882, %v896
    %v901 = vsub.f32 %v883, %v897
    %v902 = vsub.f32 %v884, %v898
    %v903 = vsub.f32 %v885, %v899
    %v904 = vmul.f32 %v900, %v900
    %v905 = vmul.f32 %v901, %v901
    %v906 = vmul.f32 %v902, %v902
    %v907 = vmul.f32 %v903, %v903
    %908 = vadd.xlane.f32.xlu0 %v904
    %v909 = vpop.xlane.xlu0 %908
    %910 = vadd.xlane.f32.xlu0 %v905
    %v911 = vpop.xlane.xlu0 %910
    %912 = vadd.xlane.f32.xlu0 %v906
    %v913 = vpop.xlane.xlu0 %912
    %914 = vadd.xlane.f32.xlu0 %v907
    %v915 = vpop.xlane.xlu0 %914
    %v916 = vmul.f32 %v909, %v208
    %v917 = vmul.f32 %v911, %v208
    %v918 = vmul.f32 %v913, %v208
    %v919 = vmul.f32 %v915, %v208
    %v920 = vadd.f32 %v916, 1e-05
    %v921 = vadd.f32 %v917, 1e-05
    %v922 = vadd.f32 %v918, 1e-05
    %v923 = vadd.f32 %v919, 1e-05
    %v924 = vrsqrt.pop %v920
    %v925 = vmul.f32 %v924, %v920
    %v926 = vmul.f32 %v925, %v924
    %v927 = vmul.f32 0.5, %v926
    %v928 = vsub.f32 1.5, %v927
    %v929 = vmul.f32 %v924, %v928
    %vm930 = vweird.f32 %v920
    %vm931 = vweird.f32 %v924
    %vm932 = vmor %vm930, %vm931
    %v933 = vsel %vm932, %v924, %v929
    %v934 = vrsqrt.pop %v921
    %v935 = vmul.f32 %v934, %v921
    %v936 = vmul.f32 %v935, %v934
    %v937 = vmul.f32 0.5, %v936
    %v938 = vsub.f32 1.5, %v937
    %v939 = vmul.f32 %v934, %v938
    %vm940 = vweird.f32 %v921
    %vm941 = vweird.f32 %v934
    %vm942 = vmor %vm940, %vm941
    %v943 = vsel %vm942, %v934, %v939
    %v944 = vrsqrt.pop %v922
    %v945 = vmul.f32 %v944, %v922
    %v946 = vmul.f32 %v945, %v944
    %v947 = vmul.f32 0.5, %v946
    %v948 = vsub.f32 1.5, %v947
    %v949 = vmul.f32 %v944, %v948
    %vm950 = vweird.f32 %v922
    %vm951 = vweird.f32 %v944
    %vm952 = vmor %vm950, %vm951
    %v953 = vsel %vm952, %v944, %v949
    %v954 = vrsqrt.pop %v923
    %v955 = vmul.f32 %v954, %v923
    %v956 = vmul.f32 %v955, %v954
    %v957 = vmul.f32 0.5, %v956
    %v958 = vsub.f32 1.5, %v957
    %v959 = vmul.f32 %v954, %v958
    %vm960 = vweird.f32 %v923
    %vm961 = vweird.f32 %v954
    %vm962 = vmor %vm960, %vm961
    %v963 = vsel %vm962, %v954, %v959
    %v964 = vmul.f32 %v900, %v933
    %v965 = vmul.f32 %v901, %v943
    %v966 = vmul.f32 %v902, %v953
    %v967 = vmul.f32 %v903, %v963
    %v969 = vperm.slane %v886, 0
    %v971 = vmul.f32 %v964, %v969
    %v972 = vmul.f32 %v965, %v969
    %v973 = vmul.f32 %v966, %v969
    %v974 = vmul.f32 %v967, %v969
    %v976 = vperm.slane %v887, 0
    %v978 = vadd.f32 %v971, %v976
    %v979 = vadd.f32 %v972, %v976
    %v980 = vadd.f32 %v973, %v976
    %v981 = vadd.f32 %v974, %v976
    %v982 = vpack.c.bf16 %v979, %v978
    %v983 = vpack.c.bf16 %v981, %v980
    %v984 = vld [vmem:[#allocation14] sm:$0xff]
    %v985 = vld [vmem:[#allocation14 + $0x10] sm:$0xff]
    %v986 = vld [vmem:[#allocation14 + $0x20] sm:$0xff]
    %v987 = vld [vmem:[#allocation14 + $0x30] sm:$0xff]
    %v988 = vld [vmem:[#allocation14 + $0x40] sm:$0xff]
    %v989 = vld [vmem:[#allocation14 + $0x50] sm:$0xff]
    %v990 = vld [vmem:[#allocation14 + $0x60] sm:$0xff]
    %v991 = vld [vmem:[#allocation14 + $0x70] sm:$0xff]
    %v992 = vld [vmem:[#allocation14 + $0x80] sm:$0xff]
    %v993 = vld [vmem:[#allocation14 + $0x90] sm:$0xff]
    %v994 = vld [vmem:[#allocation14 + $0xa0] sm:$0xff]
    %v995 = vld [vmem:[#allocation14 + $0xb0] sm:$0xff]
    %v996 = vld [vmem:[#allocation14 + $0xc0] sm:$0xff]
    %v997 = vld [vmem:[#allocation14 + $0xd0] sm:$0xff]
    %v998 = vld [vmem:[#allocation14 + $0xe0] sm:$0xff]
    %v999 = vld [vmem:[#allocation14 + $0xf0] sm:$0xff]
    %v1000 = vld [vmem:[%s12] sm:$0x3]
    %v1002 = vperm.slane %v1000, 0
    %v1003 = vperm.slane %v1000, 1
    %v1022 = vunpack.c.l.b16 %v984
    %v1023 = vunpack.c.h.b16 %v984
    %v1024 = vunpack.c.l.b16 %v985
    %v1025 = vunpack.c.h.b16 %v985
    %v1026 = vunpack.c.l.b16 %v986
    %v1027 = vunpack.c.h.b16 %v986
    %v1028 = vunpack.c.l.b16 %v987
    %v1029 = vunpack.c.h.b16 %v987
    %v1030 = vunpack.c.l.b16 %v988
    %v1031 = vunpack.c.h.b16 %v988
    %v1032 = vunpack.c.l.b16 %v989
    %v1033 = vunpack.c.h.b16 %v989
    %v1034 = vunpack.c.l.b16 %v990
    %v1035 = vunpack.c.h.b16 %v990
    %v1036 = vunpack.c.l.b16 %v991
    %v1037 = vunpack.c.h.b16 %v991
    %v1038 = vunpack.c.l.b16 %v992
    %v1039 = vunpack.c.h.b16 %v992
    %v1040 = vunpack.c.l.b16 %v993
    %v1041 = vunpack.c.h.b16 %v993
    %v1042 = vunpack.c.l.b16 %v994
    %v1043 = vunpack.c.h.b16 %v994
    %v1044 = vunpack.c.l.b16 %v995
    %v1045 = vunpack.c.h.b16 %v995
    %v1046 = vunpack.c.l.b16 %v996
    %v1047 = vunpack.c.h.b16 %v996
    %v1048 = vunpack.c.l.b16 %v997
    %v1049 = vunpack.c.h.b16 %v997
    %v1050 = vunpack.c.l.b16 %v998
    %v1051 = vunpack.c.h.b16 %v998
    %v1052 = vunpack.c.l.b16 %v999
    %v1053 = vunpack.c.h.b16 %v999
    %v1054 = vpack.c.b16 %v1024, %v1022
    %v1055 = vpack.c.b16 %v1025, %v1023
    %v1056 = vpack.c.b16 %v1028, %v1026
    %v1057 = vpack.c.b16 %v1029, %v1027
    %v1058 = vpack.c.b16 %v1032, %v1030
    %v1059 = vpack.c.b16 %v1033, %v1031
    %v1060 = vpack.c.b16 %v1036, %v1034
    %v1061 = vpack.c.b16 %v1037, %v1035
    %v1062 = vpack.c.b16 %v1040, %v1038
    %v1063 = vpack.c.b16 %v1041, %v1039
    %v1064 = vpack.c.b16 %v1044, %v1042
    %v1065 = vpack.c.b16 %v1045, %v1043
    %v1066 = vpack.c.b16 %v1048, %v1046
    %v1067 = vpack.c.b16 %v1049, %v1047
    %v1068 = vpack.c.b16 %v1052, %v1050
    %v1069 = vpack.c.b16 %v1053, %v1051
    %1086 = vmatpush.bf16.msra.mxu0 %v1068
    %1087 = vmatpush.bf16.msra.mxu0 %v1066
    %1088 = vmatpush.bf16.msra.mxu0 %v1064
    %1089 = vmatpush.bf16.msra.mxu0 %v1062
    %1090 = vmatpush.bf16.msra.mxu0 %v1060
    %1091 = vmatpush.bf16.msra.mxu0 %v1058
    %1092 = vmatpush.bf16.msra.mxu0 %v1056
    %1093 = vmatpush.bf16.msra.mxu0 %v1054
    %1094 = vmatmul.bf16.gmra.mxu0 %v982
    %v1095 = vpop.f32.mrf.mxu0
    %v1096 = vadd.f32 %v1002, %v1095
    %v1097 = vpop.f32.mrf.mxu0
    %v1098 = vadd.f32 %v1002, %v1097
    %1099 = vmatmul.bf16.gmra.mxu0 %v983
    %v1100 = vpop.f32.mrf.mxu0
    %v1101 = vadd.f32 %v1002, %v1100
    %v1102 = vpop.f32.mrf.mxu0
    %v1103 = vadd.f32 %v1002, %v1102
    %1104 = vdwg.mxu0
    %1105 = vmatpush.bf16.msra.mxu0 %v1069
    %1106 = vmatpush.bf16.msra.mxu0 %v1067
    %1107 = vmatpush.bf16.msra.mxu0 %v1065
    %1108 = vmatpush.bf16.msra.mxu0 %v1063
    %1109 = vmatpush.bf16.msra.mxu0 %v1061
    %1110 = vmatpush.bf16.msra.mxu0 %v1059
    %1111 = vmatpush.bf16.msra.mxu0 %v1057
    %1112 = vmatpush.bf16.msra.mxu0 %v1055
    %1113 = vmatmul.bf16.gmra.mxu0 %v982
    %v1114 = vpop.f32.mrf.mxu0
    %v1115 = vadd.f32 %v1003, %v1114
    %v1116 = vpop.f32.mrf.mxu0
    %v1117 = vadd.f32 %v1003, %v1116
    %1118 = vmatmul.bf16.gmra.mxu0 %v983
    %v1119 = vpop.f32.mrf.mxu0
    %v1120 = vadd.f32 %v1003, %v1119
    %v1121 = vpop.f32.mrf.mxu0
    %v1122 = vadd.f32 %v1003, %v1121
    %1123 = vdwg.mxu0
    %v1124 = vmul.f32 %v1096, 0.5
    %v1125 = vmul.f32 %v1115, 0.5
    %v1126 = vmul.f32 %v1098, 0.5
    %v1127 = vmul.f32 %v1117, 0.5
    %v1128 = vmul.f32 %v1101, 0.5
    %v1129 = vmul.f32 %v1120, 0.5
    %v1130 = vmul.f32 %v1103, 0.5
    %v1131 = vmul.f32 %v1122, 0.5
    %v1132 = vmul.f32 %v1096, 0.70710677
    %v1133 = vmul.f32 %v1115, 0.70710677
    %v1134 = vmul.f32 %v1098, 0.70710677
    %v1135 = vmul.f32 %v1117, 0.70710677
    %v1136 = vmul.f32 %v1101, 0.70710677
    %v1137 = vmul.f32 %v1120, 0.70710677
    %v1138 = vmul.f32 %v1103, 0.70710677
    %v1139 = vmul.f32 %v1122, 0.70710677
    %v1140 = vmul.f32 %v1132, %v1132
    %v1141 = vmin.f32 16.0, %v1140
    %v1142 = vmul.f32 %v1141, 2.1237322e-06
    %v1143 = vadd.f32 %v1142, 0.00028619796
    %v1144 = vmul.f32 %v1141, %v1143
    %v1145 = vadd.f32 %v1144, 0.0036580483
    %v1146 = vmul.f32 %v1141, %v1145
    %v1147 = vadd.f32 %v1146, 0.05243302
    %v1148 = vmul.f32 %v1141, %v1147
    %v1149 = vadd.f32 %v1148, 0.18741608
    %v1150 = vmul.f32 %v1141, %v1149
    %v1151 = vadd.f32 %v1150, 1.1283791
    %v1152 = vmul.f32 %v1132, %v1151
    %v1153 = vmul.f32 %v1141, 3.8918573e-05
    %v1154 = vadd.f32 %v1153, 0.001143296
    %v1155 = vmul.f32 %v1141, %v1154
    %v1156 = vadd.f32 %v1155, 0.014752088
    %v1157 = vmul.f32 %v1141, %v1156
    %v1158 = vadd.f32 %v1157, 0.112945676
    %v1159 = vmul.f32 %v1141, %v1158
    %v1160 = vadd.f32 %v1159, 0.4994258
    %v1161 = vmul.f32 %v1141, %v1160
    %v1162 = vadd.f32 %v1161, 1.0
    %v1163 = vrcp.pop %v1162
    %v1164 = vmul.f32 %v1162, %v1163
    %v1165 = vsub.f32 1.0, %v1164
    %v1166 = vmul.f32 %v1163, %v1165
    %v1167 = vadd.f32 %v1163, %v1166
    %vm1168 = vweird.f32 %v1162
    %vm1169 = vweird.f32 %v1163
    %vm1170 = vmor %vm1168, %vm1169
    %v1171 = vsel %vm1170, %v1163, %v1167
    %v1172 = vand.u32 2147483647, %v1162
    %vm1173 = vcmp.eq.f32.partialorder %v1172, 8.507059e+37
    %v1174 = vand.u32 %v1162, 2147483648
    %v1175 = vor.u32 1.1754944e-38, %v1174
    %v1176 = vsel %vm1173, %v1175, %v1171
    %v1177 = vmul.f32 %v1152, %v1176
    %v1178 = vmin.f32 %v1177, 1.0
    %v1179 = vmax.f32 %v1178, -1.0
    %v1180 = vmul.f32 %v1133, %v1133
    %v1181 = vmin.f32 16.0, %v1180
    %v1182 = vmul.f32 %v1181, 2.1237322e-06
    %v1183 = vadd.f32 %v1182, 0.00028619796
    %v1184 = vmul.f32 %v1181, %v1183
    %v1185 = vadd.f32 %v1184, 0.0036580483
    %v1186 = vmul.f32 %v1181, %v1185
    %v1187 = vadd.f32 %v1186, 0.05243302
    %v1188 = vmul.f32 %v1181, %v1187
    %v1189 = vadd.f32 %v1188, 0.18741608
    %v1190 = vmul.f32 %v1181, %v1189
    %v1191 = vadd.f32 %v1190, 1.1283791
    %v1192 = vmul.f32 %v1133, %v1191
    %v1193 = vmul.f32 %v1181, 3.8918573e-05
    %v1194 = vadd.f32 %v1193, 0.001143296
    %v1195 = vmul.f32 %v1181, %v1194
    %v1196 = vadd.f32 %v1195, 0.014752088
    %v1197 = vmul.f32 %v1181, %v1196
    %v1198 = vadd.f32 %v1197, 0.112945676
    %v1199 = vmul.f32 %v1181, %v1198
    %v1200 = vadd.f32 %v1199, 0.4994258
    %v1201 = vmul.f32 %v1181, %v1200
    %v1202 = vadd.f32 %v1201, 1.0
    %v1203 = vrcp.pop %v1202
    %v1204 = vmul.f32 %v1202, %v1203
    %v1205 = vsub.f32 1.0, %v1204
    %v1206 = vmul.f32 %v1203, %v1205
    %v1207 = vadd.f32 %v1203, %v1206
    %vm1208 = vweird.f32 %v1202
    %vm1209 = vweird.f32 %v1203
    %vm1210 = vmor %vm1208, %vm1209
    %v1211 = vsel %vm1210, %v1203, %v1207
    %v1212 = vand.u32 2147483647, %v1202
    %vm1213 = vcmp.eq.f32.partialorder %v1212, 8.507059e+37
    %v1214 = vand.u32 %v1202, 2147483648
    %v1215 = vor.u32 1.1754944e-38, %v1214
    %v1216 = vsel %vm1213, %v1215, %v1211
    %v1217 = vmul.f32 %v1192, %v1216
    %v1218 = vmin.f32 %v1217, 1.0
    %v1219 = vmax.f32 %v1218, -1.0
    %v1220 = vmul.f32 %v1134, %v1134
    %v1221 = vmin.f32 16.0, %v1220
    %v1222 = vmul.f32 %v1221, 2.1237322e-06
    %v1223 = vadd.f32 %v1222, 0.00028619796
    %v1224 = vmul.f32 %v1221, %v1223
    %v1225 = vadd.f32 %v1224, 0.0036580483
    %v1226 = vmul.f32 %v1221, %v1225
    %v1227 = vadd.f32 %v1226, 0.05243302
    %v1228 = vmul.f32 %v1221, %v1227
    %v1229 = vadd.f32 %v1228, 0.18741608
    %v1230 = vmul.f32 %v1221, %v1229
    %v1231 = vadd.f32 %v1230, 1.1283791
    %v1232 = vmul.f32 %v1134, %v1231
    %v1233 = vmul.f32 %v1221, 3.8918573e-05
    %v1234 = vadd.f32 %v1233, 0.001143296
    %v1235 = vmul.f32 %v1221, %v1234
    %v1236 = vadd.f32 %v1235, 0.014752088
    %v1237 = vmul.f32 %v1221, %v1236
    %v1238 = vadd.f32 %v1237, 0.112945676
    %v1239 = vmul.f32 %v1221, %v1238
    %v1240 = vadd.f32 %v1239, 0.4994258
    %v1241 = vmul.f32 %v1221, %v1240
    %v1242 = vadd.f32 %v1241, 1.0
    %v1243 = vrcp.pop %v1242
    %v1244 = vmul.f32 %v1242, %v1243
    %v1245 = vsub.f32 1.0, %v1244
    %v1246 = vmul.f32 %v1243, %v1245
    %v1247 = vadd.f32 %v1243, %v1246
    %vm1248 = vweird.f32 %v1242
    %vm1249 = vweird.f32 %v1243
    %vm1250 = vmor %vm1248, %vm1249
    %v1251 = vsel %vm1250, %v1243, %v1247
    %v1252 = vand.u32 2147483647, %v1242
    %vm1253 = vcmp.eq.f32.partialorder %v1252, 8.507059e+37
    %v1254 = vand.u32 %v1242, 2147483648
    %v1255 = vor.u32 1.1754944e-38, %v1254
    %v1256 = vsel %vm1253, %v1255, %v1251
    %v1257 = vmul.f32 %v1232, %v1256
    %v1258 = vmin.f32 %v1257, 1.0
    %v1259 = vmax.f32 %v1258, -1.0
    %v1260 = vmul.f32 %v1135, %v1135
    %v1261 = vmin.f32 16.0, %v1260
    %v1262 = vmul.f32 %v1261, 2.1237322e-06
    %v1263 = vadd.f32 %v1262, 0.00028619796
    %v1264 = vmul.f32 %v1261, %v1263
    %v1265 = vadd.f32 %v1264, 0.0036580483
    %v1266 = vmul.f32 %v1261, %v1265
    %v1267 = vadd.f32 %v1266, 0.05243302
    %v1268 = vmul.f32 %v1261, %v1267
    %v1269 = vadd.f32 %v1268, 0.18741608
    %v1270 = vmul.f32 %v1261, %v1269
    %v1271 = vadd.f32 %v1270, 1.1283791
    %v1272 = vmul.f32 %v1135, %v1271
    %v1273 = vmul.f32 %v1261, 3.8918573e-05
    %v1274 = vadd.f32 %v1273, 0.001143296
    %v1275 = vmul.f32 %v1261, %v1274
    %v1276 = vadd.f32 %v1275, 0.014752088
    %v1277 = vmul.f32 %v1261, %v1276
    %v1278 = vadd.f32 %v1277, 0.112945676
    %v1279 = vmul.f32 %v1261, %v1278
    %v1280 = vadd.f32 %v1279, 0.4994258
    %v1281 = vmul.f32 %v1261, %v1280
    %v1282 = vadd.f32 %v1281, 1.0
    %v1283 = vrcp.pop %v1282
    %v1284 = vmul.f32 %v1282, %v1283
    %v1285 = vsub.f32 1.0, %v1284
    %v1286 = vmul.f32 %v1283, %v1285
    %v1287 = vadd.f32 %v1283, %v1286
    %vm1288 = vweird.f32 %v1282
    %vm1289 = vweird.f32 %v1283
    %vm1290 = vmor %vm1288, %vm1289
    %v1291 = vsel %vm1290, %v1283, %v1287
    %v1292 = vand.u32 2147483647, %v1282
    %vm1293 = vcmp.eq.f32.partialorder %v1292, 8.507059e+37
    %v1294 = vand.u32 %v1282, 2147483648
    %v1295 = vor.u32 1.1754944e-38, %v1294
    %v1296 = vsel %vm1293, %v1295, %v1291
    %v1297 = vmul.f32 %v1272, %v1296
    %v1298 = vmin.f32 %v1297, 1.0
    %v1299 = vmax.f32 %v1298, -1.0
    %v1300 = vmul.f32 %v1136, %v1136
    %v1301 = vmin.f32 16.0, %v1300
    %v1302 = vmul.f32 %v1301, 2.1237322e-06
    %v1303 = vadd.f32 %v1302, 0.00028619796
    %v1304 = vmul.f32 %v1301, %v1303
    %v1305 = vadd.f32 %v1304, 0.0036580483
    %v1306 = vmul.f32 %v1301, %v1305
    %v1307 = vadd.f32 %v1306, 0.05243302
    %v1308 = vmul.f32 %v1301, %v1307
    %v1309 = vadd.f32 %v1308, 0.18741608
    %v1310 = vmul.f32 %v1301, %v1309
    %v1311 = vadd.f32 %v1310, 1.1283791
    %v1312 = vmul.f32 %v1136, %v1311
    %v1313 = vmul.f32 %v1301, 3.8918573e-05
    %v1314 = vadd.f32 %v1313, 0.001143296
    %v1315 = vmul.f32 %v1301, %v1314
    %v1316 = vadd.f32 %v1315, 0.014752088
    %v1317 = vmul.f32 %v1301, %v1316
    %v1318 = vadd.f32 %v1317, 0.112945676
    %v1319 = vmul.f32 %v1301, %v1318
    %v1320 = vadd.f32 %v1319, 0.4994258
    %v1321 = vmul.f32 %v1301, %v1320
    %v1322 = vadd.f32 %v1321, 1.0
    %v1323 = vrcp.pop %v1322
    %v1324 = vmul.f32 %v1322, %v1323
    %v1325 = vsub.f32 1.0, %v1324
    %v1326 = vmul.f32 %v1323, %v1325
    %v1327 = vadd.f32 %v1323, %v1326
    %vm1328 = vweird.f32 %v1322
    %vm1329 = vweird.f32 %v1323
    %vm1330 = vmor %vm1328, %vm1329
    %v1331 = vsel %vm1330, %v1323, %v1327
    %v1332 = vand.u32 2147483647, %v1322
    %vm1333 = vcmp.eq.f32.partialorder %v1332, 8.507059e+37
    %v1334 = vand.u32 %v1322, 2147483648
    %v1335 = vor.u32 1.1754944e-38, %v1334
    %v1336 = vsel %vm1333, %v1335, %v1331
    %v1337 = vmul.f32 %v1312, %v1336
    %v1338 = vmin.f32 %v1337, 1.0
    %v1339 = vmax.f32 %v1338, -1.0
    %v1340 = vmul.f32 %v1137, %v1137
    %v1341 = vmin.f32 16.0, %v1340
    %v1342 = vmul.f32 %v1341, 2.1237322e-06
    %v1343 = vadd.f32 %v1342, 0.00028619796
    %v1344 = vmul.f32 %v1341, %v1343
    %v1345 = vadd.f32 %v1344, 0.0036580483
    %v1346 = vmul.f32 %v1341, %v1345
    %v1347 = vadd.f32 %v1346, 0.05243302
    %v1348 = vmul.f32 %v1341, %v1347
    %v1349 = vadd.f32 %v1348, 0.18741608
    %v1350 = vmul.f32 %v1341, %v1349
    %v1351 = vadd.f32 %v1350, 1.1283791
    %v1352 = vmul.f32 %v1137, %v1351
    %v1353 = vmul.f32 %v1341, 3.8918573e-05
    %v1354 = vadd.f32 %v1353, 0.001143296
    %v1355 = vmul.f32 %v1341, %v1354
    %v1356 = vadd.f32 %v1355, 0.014752088
    %v1357 = vmul.f32 %v1341, %v1356
    %v1358 = vadd.f32 %v1357, 0.112945676
    %v1359 = vmul.f32 %v1341, %v1358
    %v1360 = vadd.f32 %v1359, 0.4994258
    %v1361 = vmul.f32 %v1341, %v1360
    %v1362 = vadd.f32 %v1361, 1.0
    %v1363 = vrcp.pop %v1362
    %v1364 = vmul.f32 %v1362, %v1363
    %v1365 = vsub.f32 1.0, %v1364
    %v1366 = vmul.f32 %v1363, %v1365
    %v1367 = vadd.f32 %v1363, %v1366
    %vm1368 = vweird.f32 %v1362
    %vm1369 = vweird.f32 %v1363
    %vm1370 = vmor %vm1368, %vm1369
    %v1371 = vsel %vm1370, %v1363, %v1367
    %v1372 = vand.u32 2147483647, %v1362
    %vm1373 = vcmp.eq.f32.partialorder %v1372, 8.507059e+37
    %v1374 = vand.u32 %v1362, 2147483648
    %v1375 = vor.u32 1.1754944e-38, %v1374
    %v1376 = vsel %vm1373, %v1375, %v1371
    %v1377 = vmul.f32 %v1352, %v1376
    %v1378 = vmin.f32 %v1377, 1.0
    %v1379 = vmax.f32 %v1378, -1.0
    %v1380 = vmul.f32 %v1138, %v1138
    %v1381 = vmin.f32 16.0, %v1380
    %v1382 = vmul.f32 %v1381, 2.1237322e-06
    %v1383 = vadd.f32 %v1382, 0.00028619796
    %v1384 = vmul.f32 %v1381, %v1383
    %v1385 = vadd.f32 %v1384, 0.0036580483
    %v1386 = vmul.f32 %v1381, %v1385
    %v1387 = vadd.f32 %v1386, 0.05243302
    %v1388 = vmul.f32 %v1381, %v1387
    %v1389 = vadd.f32 %v1388, 0.18741608
    %v1390 = vmul.f32 %v1381, %v1389
    %v1391 = vadd.f32 %v1390, 1.1283791
    %v1392 = vmul.f32 %v1138, %v1391
    %v1393 = vmul.f32 %v1381, 3.8918573e-05
    %v1394 = vadd.f32 %v1393, 0.001143296
    %v1395 = vmul.f32 %v1381, %v1394
    %v1396 = vadd.f32 %v1395, 0.014752088
    %v1397 = vmul.f32 %v1381, %v1396
    %v1398 = vadd.f32 %v1397, 0.112945676
    %v1399 = vmul.f32 %v1381, %v1398
    %v1400 = vadd.f32 %v1399, 0.4994258
    %v1401 = vmul.f32 %v1381, %v1400
    %v1402 = vadd.f32 %v1401, 1.0
    %v1403 = vrcp.pop %v1402
    %v1404 = vmul.f32 %v1402, %v1403
    %v1405 = vsub.f32 1.0, %v1404
    %v1406 = vmul.f32 %v1403, %v1405
    %v1407 = vadd.f32 %v1403, %v1406
    %vm1408 = vweird.f32 %v1402
    %vm1409 = vweird.f32 %v1403
    %vm1410 = vmor %vm1408, %vm1409
    %v1411 = vsel %vm1410, %v1403, %v1407
    %v1412 = vand.u32 2147483647, %v1402
    %vm1413 = vcmp.eq.f32.partialorder %v1412, 8.507059e+37
    %v1414 = vand.u32 %v1402, 2147483648
    %v1415 = vor.u32 1.1754944e-38, %v1414
    %v1416 = vsel %vm1413, %v1415, %v1411
    %v1417 = vmul.f32 %v1392, %v1416
    %v1418 = vmin.f32 %v1417, 1.0
    %v1419 = vmax.f32 %v1418, -1.0
    %v1420 = vmul.f32 %v1139, %v1139
    %v1421 = vmin.f32 16.0, %v1420
    %v1422 = vmul.f32 %v1421, 2.1237322e-06
    %v1423 = vadd.f32 %v1422, 0.00028619796
    %v1424 = vmul.f32 %v1421, %v1423
    %v1425 = vadd.f32 %v1424, 0.0036580483
    %v1426 = vmul.f32 %v1421, %v1425
    %v1427 = vadd.f32 %v1426, 0.05243302
    %v1428 = vmul.f32 %v1421, %v1427
    %v1429 = vadd.f32 %v1428, 0.18741608
    %v1430 = vmul.f32 %v1421, %v1429
    %v1431 = vadd.f32 %v1430, 1.1283791
    %v1432 = vmul.f32 %v1139, %v1431
    %v1433 = vmul.f32 %v1421, 3.8918573e-05
    %v1434 = vadd.f32 %v1433, 0.001143296
    %v1435 = vmul.f32 %v1421, %v1434
    %v1436 = vadd.f32 %v1435, 0.014752088
    %v1437 = vmul.f32 %v1421, %v1436
    %v1438 = vadd.f32 %v1437, 0.112945676
    %v1439 = vmul.f32 %v1421, %v1438
    %v1440 = vadd.f32 %v1439, 0.4994258
    %v1441 = vmul.f32 %v1421, %v1440
    %v1442 = vadd.f32 %v1441, 1.0
    %v1443 = vrcp.pop %v1442
    %v1444 = vmul.f32 %v1442, %v1443
    %v1445 = vsub.f32 1.0, %v1444
    %v1446 = vmul.f32 %v1443, %v1445
    %v1447 = vadd.f32 %v1443, %v1446
    %vm1448 = vweird.f32 %v1442
    %vm1449 = vweird.f32 %v1443
    %vm1450 = vmor %vm1448, %vm1449
    %v1451 = vsel %vm1450, %v1443, %v1447
    %v1452 = vand.u32 2147483647, %v1442
    %vm1453 = vcmp.eq.f32.partialorder %v1452, 8.507059e+37
    %v1454 = vand.u32 %v1442, 2147483648
    %v1455 = vor.u32 1.1754944e-38, %v1454
    %v1456 = vsel %vm1453, %v1455, %v1451
    %v1457 = vmul.f32 %v1432, %v1456
    %v1458 = vmin.f32 %v1457, 1.0
    %v1459 = vmax.f32 %v1458, -1.0
    %v1460 = vadd.f32 %v1179, 1.0
    %v1461 = vadd.f32 %v1219, 1.0
    %v1462 = vadd.f32 %v1259, 1.0
    %v1463 = vadd.f32 %v1299, 1.0
    %v1464 = vadd.f32 %v1339, 1.0
    %v1465 = vadd.f32 %v1379, 1.0
    %v1466 = vadd.f32 %v1419, 1.0
    %v1467 = vadd.f32 %v1459, 1.0
    %v1468 = vmul.f32 %v1124, %v1460
    %v1469 = vmul.f32 %v1125, %v1461
    %v1470 = vmul.f32 %v1126, %v1462
    %v1471 = vmul.f32 %v1127, %v1463
    %v1472 = vmul.f32 %v1128, %v1464
    %v1473 = vmul.f32 %v1129, %v1465
    %v1474 = vmul.f32 %v1130, %v1466
    %v1475 = vmul.f32 %v1131, %v1467
    %v1476 = vpack.c.bf16 %v1470, %v1468
    %v1477 = vpack.c.bf16 %v1471, %v1469
    %v1478 = vpack.c.bf16 %v1474, %v1472
    %v1479 = vpack.c.bf16 %v1475, %v1473
    %v1480 = vld [vmem:[#allocation15] sm:$0xf]
    %v1481 = vld [vmem:[#allocation15 + $0x4] sm:$0xf]
    %v1482 = vld [vmem:[#allocation15 + $0x8] sm:$0xf]
    %v1483 = vld [vmem:[#allocation15 + $0xc] sm:$0xf]
    %v1484 = vld [vmem:[#allocation15 + $0x10] sm:$0xf]
    %v1485 = vld [vmem:[#allocation15 + $0x14] sm:$0xf]
    %v1486 = vld [vmem:[#allocation15 + $0x18] sm:$0xf]
    %v1487 = vld [vmem:[#allocation15 + $0x1c] sm:$0xf]
    %v1488 = vld [vmem:[#allocation15 + $0x20] sm:$0xf]
    %v1489 = vld [vmem:[#allocation15 + $0x24] sm:$0xf]
    %v1490 = vld [vmem:[#allocation15 + $0x28] sm:$0xf]
    %v1491 = vld [vmem:[#allocation15 + $0x2c] sm:$0xf]
    %v1492 = vld [vmem:[#allocation15 + $0x30] sm:$0xf]
    %v1493 = vld [vmem:[#allocation15 + $0x34] sm:$0xf]
    %v1494 = vld [vmem:[#allocation15 + $0x38] sm:$0xf]
    %v1495 = vld [vmem:[#allocation15 + $0x3c] sm:$0xf]
    %v1496 = vld [vmem:[#allocation15 + $0x40] sm:$0xf]
    %v1497 = vld [vmem:[#allocation15 + $0x44] sm:$0xf]
    %v1498 = vld [vmem:[#allocation15 + $0x48] sm:$0xf]
    %v1499 = vld [vmem:[#allocation15 + $0x4c] sm:$0xf]
    %v1500 = vld [vmem:[#allocation15 + $0x50] sm:$0xf]
    %v1501 = vld [vmem:[#allocation15 + $0x54] sm:$0xf]
    %v1502 = vld [vmem:[#allocation15 + $0x58] sm:$0xf]
    %v1503 = vld [vmem:[#allocation15 + $0x5c] sm:$0xf]
    %v1504 = vld [vmem:[#allocation15 + $0x60] sm:$0xf]
    %v1505 = vld [vmem:[#allocation15 + $0x64] sm:$0xf]
    %v1506 = vld [vmem:[#allocation15 + $0x68] sm:$0xf]
    %v1507 = vld [vmem:[#allocation15 + $0x6c] sm:$0xf]
    %v1508 = vld [vmem:[#allocation15 + $0x70] sm:$0xf]
    %v1509 = vld [vmem:[#allocation15 + $0x74] sm:$0xf]
    %v1510 = vld [vmem:[#allocation15 + $0x78] sm:$0xf]
    %v1511 = vld [vmem:[#allocation15 + $0x7c] sm:$0xf]
    %v1512 = vld [vmem:[#allocation14 + $0x8] sm:$0xff]
    %v1513 = vld [vmem:[#allocation14 + $0x18] sm:$0xff]
    %v1514 = vld [vmem:[#allocation14 + $0x28] sm:$0xff]
    %v1515 = vld [vmem:[#allocation14 + $0x38] sm:$0xff]
    %v1516 = vld [vmem:[#allocation14 + $0x48] sm:$0xff]
    %v1517 = vld [vmem:[#allocation14 + $0x58] sm:$0xff]
    %v1518 = vld [vmem:[#allocation14 + $0x68] sm:$0xff]
    %v1519 = vld [vmem:[#allocation14 + $0x78] sm:$0xff]
    %v1520 = vld [vmem:[#allocation14 + $0x88] sm:$0xff]
    %v1521 = vld [vmem:[#allocation14 + $0x98] sm:$0xff]
    %v1522 = vld [vmem:[#allocation14 + $0xa8] sm:$0xff]
    %v1523 = vld [vmem:[#allocation14 + $0xb8] sm:$0xff]
    %v1524 = vld [vmem:[#allocation14 + $0xc8] sm:$0xff]
    %v1525 = vld [vmem:[#allocation14 + $0xd8] sm:$0xff]
    %v1526 = vld [vmem:[#allocation14 + $0xe8] sm:$0xff]
    %v1527 = vld [vmem:[#allocation14 + $0xf8] sm:$0xff]
    %v1528 = vld [vmem:[%s12 + $0x2] sm:$0x3]
    %v1530 = vperm.slane %v1528, 0
    %v1531 = vperm.slane %v1528, 1
    %v1550 = vunpack.c.l.b16 %v1512
    %v1551 = vunpack.c.h.b16 %v1512
    %v1552 = vunpack.c.l.b16 %v1513
    %v1553 = vunpack.c.h.b16 %v1513
    %v1554 = vunpack.c.l.b16 %v1514
    %v1555 = vunpack.c.h.b16 %v1514
    %v1556 = vunpack.c.l.b16 %v1515
    %v1557 = vunpack.c.h.b16 %v1515
    %v1558 = vunpack.c.l.b16 %v1516
    %v1559 = vunpack.c.h.b16 %v1516
    %v1560 = vunpack.c.l.b16 %v1517
    %v1561 = vunpack.c.h.b16 %v1517
    %v1562 = vunpack.c.l.b16 %v1518
    %v1563 = vunpack.c.h.b16 %v1518
    %v1564 = vunpack.c.l.b16 %v1519
    %v1565 = vunpack.c.h.b16 %v1519
    %v1566 = vunpack.c.l.b16 %v1520
    %v1567 = vunpack.c.h.b16 %v1520
    %v1568 = vunpack.c.l.b16 %v1521
    %v1569 = vunpack.c.h.b16 %v1521
    %v1570 = vunpack.c.l.b16 %v1522
    %v1571 = vunpack.c.h.b16 %v1522
    %v1572 = vunpack.c.l.b16 %v1523
    %v1573 = vunpack.c.h.b16 %v1523
    %v1574 = vunpack.c.l.b16 %v1524
    %v1575 = vunpack.c.h.b16 %v1524
    %v1576 = vunpack.c.l.b16 %v1525
    %v1577 = vunpack.c.h.b16 %v1525
    %v1578 = vunpack.c.l.b16 %v1526
    %v1579 = vunpack.c.h.b16 %v1526
    %v1580 = vunpack.c.l.b16 %v1527
    %v1581 = vunpack.c.h.b16 %v1527
    %v1582 = vpack.c.b16 %v1552, %v1550
    %v1583 = vpack.c.b16 %v1553, %v1551
    %v1584 = vpack.c.b16 %v1556, %v1554
    %v1585 = vpack.c.b16 %v1557, %v1555
    %v1586 = vpack.c.b16 %v1560, %v1558
    %v1587 = vpack.c.b16 %v1561, %v1559
    %v1588 = vpack.c.b16 %v1564, %v1562
    %v1589 = vpack.c.b16 %v1565, %v1563
    %v1590 = vpack.c.b16 %v1568, %v1566
    %v1591 = vpack.c.b16 %v1569, %v1567
    %v1592 = vpack.c.b16 %v1572, %v1570
    %v1593 = vpack.c.b16 %v1573, %v1571
    %v1594 = vpack.c.b16 %v1576, %v1574
    %v1595 = vpack.c.b16 %v1577, %v1575
    %v1596 = vpack.c.b16 %v1580, %v1578
    %v1597 = vpack.c.b16 %v1581, %v1579
    %1614 = vmatpush.bf16.msra.mxu0 %v1596
    %1615 = vmatpush.bf16.msra.mxu0 %v1594
    %1616 = vmatpush.bf16.msra.mxu0 %v1592
    %1617 = vmatpush.bf16.msra.mxu0 %v1590
    %1618 = vmatpush.bf16.msra.mxu0 %v1588
    %1619 = vmatpush.bf16.msra.mxu0 %v1586
    %1620 = vmatpush.bf16.msra.mxu0 %v1584
    %1621 = vmatpush.bf16.msra.mxu0 %v1582
    %1622 = vmatmul.bf16.gmra.mxu0 %v982
    %v1623 = vpop.f32.mrf.mxu0
    %v1624 = vadd.f32 %v1530, %v1623
    %v1625 = vpop.f32.mrf.mxu0
    %v1626 = vadd.f32 %v1530, %v1625
    %1627 = vmatmul.bf16.gmra.mxu0 %v983
    %v1628 = vpop.f32.mrf.mxu0
    %v1629 = vadd.f32 %v1530, %v1628
    %v1630 = vpop.f32.mrf.mxu0
    %v1631 = vadd.f32 %v1530, %v1630
    %1632 = vdwg.mxu0
    %1633 = vmatpush.bf16.msra.mxu0 %v1597
    %1634 = vmatpush.bf16.msra.mxu0 %v1595
    %1635 = vmatpush.bf16.msra.mxu0 %v1593
    %1636 = vmatpush.bf16.msra.mxu0 %v1591
    %1637 = vmatpush.bf16.msra.mxu0 %v1589
    %1638 = vmatpush.bf16.msra.mxu0 %v1587
    %1639 = vmatpush.bf16.msra.mxu0 %v1585
    %1640 = vmatpush.bf16.msra.mxu0 %v1583
    %1641 = vmatmul.bf16.gmra.mxu0 %v982
    %v1642 = vpop.f32.mrf.mxu0
    %v1643 = vadd.f32 %v1531, %v1642
    %v1644 = vpop.f32.mrf.mxu0
    %v1645 = vadd.f32 %v1531, %v1644
    %1646 = vmatmul.bf16.gmra.mxu0 %v983
    %v1647 = vpop.f32.mrf.mxu0
    %v1648 = vadd.f32 %v1531, %v1647
    %v1649 = vpop.f32.mrf.mxu0
    %v1650 = vadd.f32 %v1531, %v1649
    %1651 = vdwg.mxu0
    %v1652 = vmul.f32 %v1624, 0.5
    %v1653 = vmul.f32 %v1643, 0.5
    %v1654 = vmul.f32 %v1626, 0.5
    %v1655 = vmul.f32 %v1645, 0.5
    %v1656 = vmul.f32 %v1629, 0.5
    %v1657 = vmul.f32 %v1648, 0.5
    %v1658 = vmul.f32 %v1631, 0.5
    %v1659 = vmul.f32 %v1650, 0.5
    %v1660 = vmul.f32 %v1624, 0.70710677
    %v1661 = vmul.f32 %v1643, 0.70710677
    %v1662 = vmul.f32 %v1626, 0.70710677
    %v1663 = vmul.f32 %v1645, 0.70710677
    %v1664 = vmul.f32 %v1629, 0.70710677
    %v1665 = vmul.f32 %v1648, 0.70710677
    %v1666 = vmul.f32 %v1631, 0.70710677
    %v1667 = vmul.f32 %v1650, 0.70710677
    %v1668 = vmul.f32 %v1660, %v1660
    %v1669 = vmin.f32 16.0, %v1668
    %v1670 = vmul.f32 %v1669, 2.1237322e-06
    %v1671 = vadd.f32 %v1670, 0.00028619796
    %v1672 = vmul.f32 %v1669, %v1671
    %v1673 = vadd.f32 %v1672, 0.0036580483
    %v1674 = vmul.f32 %v1669, %v1673
    %v1675 = vadd.f32 %v1674, 0.05243302
    %v1676 = vmul.f32 %v1669, %v1675
    %v1677 = vadd.f32 %v1676, 0.18741608
    %v1678 = vmul.f32 %v1669, %v1677
    %v1679 = vadd.f32 %v1678, 1.1283791
    %v1680 = vmul.f32 %v1660, %v1679
    %v1681 = vmul.f32 %v1669, 3.8918573e-05
    %v1682 = vadd.f32 %v1681, 0.001143296
    %v1683 = vmul.f32 %v1669, %v1682
    %v1684 = vadd.f32 %v1683, 0.014752088
    %v1685 = vmul.f32 %v1669, %v1684
    %v1686 = vadd.f32 %v1685, 0.112945676
    %v1687 = vmul.f32 %v1669, %v1686
    %v1688 = vadd.f32 %v1687, 0.4994258
    %v1689 = vmul.f32 %v1669, %v1688
    %v1690 = vadd.f32 %v1689, 1.0
    %v1691 = vrcp.pop %v1690
    %v1692 = vmul.f32 %v1690, %v1691
    %v1693 = vsub.f32 1.0, %v1692
    %v1694 = vmul.f32 %v1691, %v1693
    %v1695 = vadd.f32 %v1691, %v1694
    %vm1696 = vweird.f32 %v1690
    %vm1697 = vweird.f32 %v1691
    %vm1698 = vmor %vm1696, %vm1697
    %v1699 = vsel %vm1698, %v1691, %v1695
    %v1700 = vand.u32 2147483647, %v1690
    %vm1701 = vcmp.eq.f32.partialorder %v1700, 8.507059e+37
    %v1702 = vand.u32 %v1690, 2147483648
    %v1703 = vor.u32 1.1754944e-38, %v1702
    %v1704 = vsel %vm1701, %v1703, %v1699
    %v1705 = vmul.f32 %v1680, %v1704
    %v1706 = vmin.f32 %v1705, 1.0
    %v1707 = vmax.f32 %v1706, -1.0
    %v1708 = vmul.f32 %v1661, %v1661
    %v1709 = vmin.f32 16.0, %v1708
    %v1710 = vmul.f32 %v1709, 2.1237322e-06
    %v1711 = vadd.f32 %v1710, 0.00028619796
    %v1712 = vmul.f32 %v1709, %v1711
    %v1713 = vadd.f32 %v1712, 0.0036580483
    %v1714 = vmul.f32 %v1709, %v1713
    %v1715 = vadd.f32 %v1714, 0.05243302
    %v1716 = vmul.f32 %v1709, %v1715
    %v1717 = vadd.f32 %v1716, 0.18741608
    %v1718 = vmul.f32 %v1709, %v1717
    %v1719 = vadd.f32 %v1718, 1.1283791
    %v1720 = vmul.f32 %v1661, %v1719
    %v1721 = vmul.f32 %v1709, 3.8918573e-05
    %v1722 = vadd.f32 %v1721, 0.001143296
    %v1723 = vmul.f32 %v1709, %v1722
    %v1724 = vadd.f32 %v1723, 0.014752088
    %v1725 = vmul.f32 %v1709, %v1724
    %v1726 = vadd.f32 %v1725, 0.112945676
    %v1727 = vmul.f32 %v1709, %v1726
    %v1728 = vadd.f32 %v1727, 0.4994258
    %v1729 = vmul.f32 %v1709, %v1728
    %v1730 = vadd.f32 %v1729, 1.0
    %v1731 = vrcp.pop %v1730
    %v1732 = vmul.f32 %v1730, %v1731
    %v1733 = vsub.f32 1.0, %v1732
    %v1734 = vmul.f32 %v1731, %v1733
    %v1735 = vadd.f32 %v1731, %v1734
    %vm1736 = vweird.f32 %v1730
    %vm1737 = vweird.f32 %v1731
    %vm1738 = vmor %vm1736, %vm1737
    %v1739 = vsel %vm1738, %v1731, %v1735
    %v1740 = vand.u32 2147483647, %v1730
    %vm1741 = vcmp.eq.f32.partialorder %v1740, 8.507059e+37
    %v1742 = vand.u32 %v1730, 2147483648
    %v1743 = vor.u32 1.1754944e-38, %v1742
    %v1744 = vsel %vm1741, %v1743, %v1739
    %v1745 = vmul.f32 %v1720, %v1744
    %v1746 = vmin.f32 %v1745, 1.0
    %v1747 = vmax.f32 %v1746, -1.0
    %v1748 = vmul.f32 %v1662, %v1662
    %v1749 = vmin.f32 16.0, %v1748
    %v1750 = vmul.f32 %v1749, 2.1237322e-06
    %v1751 = vadd.f32 %v1750, 0.00028619796
    %v1752 = vmul.f32 %v1749, %v1751
    %v1753 = vadd.f32 %v1752, 0.0036580483
    %v1754 = vmul.f32 %v1749, %v1753
    %v1755 = vadd.f32 %v1754, 0.05243302
    %v1756 = vmul.f32 %v1749, %v1755
    %v1757 = vadd.f32 %v1756, 0.18741608
    %v1758 = vmul.f32 %v1749, %v1757
    %v1759 = vadd.f32 %v1758, 1.1283791
    %v1760 = vmul.f32 %v1662, %v1759
    %v1761 = vmul.f32 %v1749, 3.8918573e-05
    %v1762 = vadd.f32 %v1761, 0.001143296
    %v1763 = vmul.f32 %v1749, %v1762
    %v1764 = vadd.f32 %v1763, 0.014752088
    %v1765 = vmul.f32 %v1749, %v1764
    %v1766 = vadd.f32 %v1765, 0.112945676
    %v1767 = vmul.f32 %v1749, %v1766
    %v1768 = vadd.f32 %v1767, 0.4994258
    %v1769 = vmul.f32 %v1749, %v1768
    %v1770 = vadd.f32 %v1769, 1.0
    %v1771 = vrcp.pop %v1770
    %v1772 = vmul.f32 %v1770, %v1771
    %v1773 = vsub.f32 1.0, %v1772
    %v1774 = vmul.f32 %v1771, %v1773
    %v1775 = vadd.f32 %v1771, %v1774
    %vm1776 = vweird.f32 %v1770
    %vm1777 = vweird.f32 %v1771
    %vm1778 = vmor %vm1776, %vm1777
    %v1779 = vsel %vm1778, %v1771, %v1775
    %v1780 = vand.u32 2147483647, %v1770
    %vm1781 = vcmp.eq.f32.partialorder %v1780, 8.507059e+37
    %v1782 = vand.u32 %v1770, 2147483648
    %v1783 = vor.u32 1.1754944e-38, %v1782
    %v1784 = vsel %vm1781, %v1783, %v1779
    %v1785 = vmul.f32 %v1760, %v1784
    %v1786 = vmin.f32 %v1785, 1.0
    %v1787 = vmax.f32 %v1786, -1.0
    %v1788 = vmul.f32 %v1663, %v1663
    %v1789 = vmin.f32 16.0, %v1788
    %v1790 = vmul.f32 %v1789, 2.1237322e-06
    %v1791 = vadd.f32 %v1790, 0.00028619796
    %v1792 = vmul.f32 %v1789, %v1791
    %v1793 = vadd.f32 %v1792, 0.0036580483
    %v1794 = vmul.f32 %v1789, %v1793
    %v1795 = vadd.f32 %v1794, 0.05243302
    %v1796 = vmul.f32 %v1789, %v1795
    %v1797 = vadd.f32 %v1796, 0.18741608
    %v1798 = vmul.f32 %v1789, %v1797
    %v1799 = vadd.f32 %v1798, 1.1283791
    %v1800 = vmul.f32 %v1663, %v1799
    %v1801 = vmul.f32 %v1789, 3.8918573e-05
    %v1802 = vadd.f32 %v1801, 0.001143296
    %v1803 = vmul.f32 %v1789, %v1802
    %v1804 = vadd.f32 %v1803, 0.014752088
    %v1805 = vmul.f32 %v1789, %v1804
    %v1806 = vadd.f32 %v1805, 0.112945676
    %v1807 = vmul.f32 %v1789, %v1806
    %v1808 = vadd.f32 %v1807, 0.4994258
    %v1809 = vmul.f32 %v1789, %v1808
    %v1810 = vadd.f32 %v1809, 1.0
    %v1811 = vrcp.pop %v1810
    %v1812 = vmul.f32 %v1810, %v1811
    %v1813 = vsub.f32 1.0, %v1812
    %v1814 = vmul.f32 %v1811, %v1813
    %v1815 = vadd.f32 %v1811, %v1814
    %vm1816 = vweird.f32 %v1810
    %vm1817 = vweird.f32 %v1811
    %vm1818 = vmor %vm1816, %vm1817
    %v1819 = vsel %vm1818, %v1811, %v1815
    %v1820 = vand.u32 2147483647, %v1810
    %vm1821 = vcmp.eq.f32.partialorder %v1820, 8.507059e+37
    %v1822 = vand.u32 %v1810, 2147483648
    %v1823 = vor.u32 1.1754944e-38, %v1822
    %v1824 = vsel %vm1821, %v1823, %v1819
    %v1825 = vmul.f32 %v1800, %v1824
    %v1826 = vmin.f32 %v1825, 1.0
    %v1827 = vmax.f32 %v1826, -1.0
    %v1828 = vmul.f32 %v1664, %v1664
    %v1829 = vmin.f32 16.0, %v1828
    %v1830 = vmul.f32 %v1829, 2.1237322e-06
    %v1831 = vadd.f32 %v1830, 0.00028619796
    %v1832 = vmul.f32 %v1829, %v1831
    %v1833 = vadd.f32 %v1832, 0.0036580483
    %v1834 = vmul.f32 %v1829, %v1833
    %v1835 = vadd.f32 %v1834, 0.05243302
    %v1836 = vmul.f32 %v1829, %v1835
    %v1837 = vadd.f32 %v1836, 0.18741608
    %v1838 = vmul.f32 %v1829, %v1837
    %v1839 = vadd.f32 %v1838, 1.1283791
    %v1840 = vmul.f32 %v1664, %v1839
    %v1841 = vmul.f32 %v1829, 3.8918573e-05
    %v1842 = vadd.f32 %v1841, 0.001143296
    %v1843 = vmul.f32 %v1829, %v1842
    %v1844 = vadd.f32 %v1843, 0.014752088
    %v1845 = vmul.f32 %v1829, %v1844
    %v1846 = vadd.f32 %v1845, 0.112945676
    %v1847 = vmul.f32 %v1829, %v1846
    %v1848 = vadd.f32 %v1847, 0.4994258
    %v1849 = vmul.f32 %v1829, %v1848
    %v1850 = vadd.f32 %v1849, 1.0
    %v1851 = vrcp.pop %v1850
    %v1852 = vmul.f32 %v1850, %v1851
    %v1853 = vsub.f32 1.0, %v1852
    %v1854 = vmul.f32 %v1851, %v1853
    %v1855 = vadd.f32 %v1851, %v1854
    %vm1856 = vweird.f32 %v1850
    %vm1857 = vweird.f32 %v1851
    %vm1858 = vmor %vm1856, %vm1857
    %v1859 = vsel %vm1858, %v1851, %v1855
    %v1860 = vand.u32 2147483647, %v1850
    %vm1861 = vcmp.eq.f32.partialorder %v1860, 8.507059e+37
    %v1862 = vand.u32 %v1850, 2147483648
    %v1863 = vor.u32 1.1754944e-38, %v1862
    %v1864 = vsel %vm1861, %v1863, %v1859
    %v1865 = vmul.f32 %v1840, %v1864
    %v1866 = vmin.f32 %v1865, 1.0
    %v1867 = vmax.f32 %v1866, -1.0
    %v1868 = vmul.f32 %v1665, %v1665
    %v1869 = vmin.f32 16.0, %v1868
    %v1870 = vmul.f32 %v1869, 2.1237322e-06
    %v1871 = vadd.f32 %v1870, 0.00028619796
    %v1872 = vmul.f32 %v1869, %v1871
    %v1873 = vadd.f32 %v1872, 0.0036580483
    %v1874 = vmul.f32 %v1869, %v1873
    %v1875 = vadd.f32 %v1874, 0.05243302
    %v1876 = vmul.f32 %v1869, %v1875
    %v1877 = vadd.f32 %v1876, 0.18741608
    %v1878 = vmul.f32 %v1869, %v1877
    %v1879 = vadd.f32 %v1878, 1.1283791
    %v1880 = vmul.f32 %v1665, %v1879
    %v1881 = vmul.f32 %v1869, 3.8918573e-05
    %v1882 = vadd.f32 %v1881, 0.001143296
    %v1883 = vmul.f32 %v1869, %v1882
    %v1884 = vadd.f32 %v1883, 0.014752088
    %v1885 = vmul.f32 %v1869, %v1884
    %v1886 = vadd.f32 %v1885, 0.112945676
    %v1887 = vmul.f32 %v1869, %v1886
    %v1888 = vadd.f32 %v1887, 0.4994258
    %v1889 = vmul.f32 %v1869, %v1888
    %v1890 = vadd.f32 %v1889, 1.0
    %v1891 = vrcp.pop %v1890
    %v1892 = vmul.f32 %v1890, %v1891
    %v1893 = vsub.f32 1.0, %v1892
    %v1894 = vmul.f32 %v1891, %v1893
    %v1895 = vadd.f32 %v1891, %v1894
    %vm1896 = vweird.f32 %v1890
    %vm1897 = vweird.f32 %v1891
    %vm1898 = vmor %vm1896, %vm1897
    %v1899 = vsel %vm1898, %v1891, %v1895
    %v1900 = vand.u32 2147483647, %v1890
    %vm1901 = vcmp.eq.f32.partialorder %v1900, 8.507059e+37
    %v1902 = vand.u32 %v1890, 2147483648
    %v1903 = vor.u32 1.1754944e-38, %v1902
    %v1904 = vsel %vm1901, %v1903, %v1899
    %v1905 = vmul.f32 %v1880, %v1904
    %v1906 = vmin.f32 %v1905, 1.0
    %v1907 = vmax.f32 %v1906, -1.0
    %v1908 = vmul.f32 %v1666, %v1666
    %v1909 = vmin.f32 16.0, %v1908
    %v1910 = vmul.f32 %v1909, 2.1237322e-06
    %v1911 = vadd.f32 %v1910, 0.00028619796
    %v1912 = vmul.f32 %v1909, %v1911
    %v1913 = vadd.f32 %v1912, 0.0036580483
    %v1914 = vmul.f32 %v1909, %v1913
    %v1915 = vadd.f32 %v1914, 0.05243302
    %v1916 = vmul.f32 %v1909, %v1915
    %v1917 = vadd.f32 %v1916, 0.18741608
    %v1918 = vmul.f32 %v1909, %v1917
    %v1919 = vadd.f32 %v1918, 1.1283791
    %v1920 = vmul.f32 %v1666, %v1919
    %v1921 = vmul.f32 %v1909, 3.8918573e-05
    %v1922 = vadd.f32 %v1921, 0.001143296
    %v1923 = vmul.f32 %v1909, %v1922
    %v1924 = vadd.f32 %v1923, 0.014752088
    %v1925 = vmul.f32 %v1909, %v1924
    %v1926 = vadd.f32 %v1925, 0.112945676
    %v1927 = vmul.f32 %v1909, %v1926
    %v1928 = vadd.f32 %v1927, 0.4994258
    %v1929 = vmul.f32 %v1909, %v1928
    %v1930 = vadd.f32 %v1929, 1.0
    %v1931 = vrcp.pop %v1930
    %v1932 = vmul.f32 %v1930, %v1931
    %v1933 = vsub.f32 1.0, %v1932
    %v1934 = vmul.f32 %v1931, %v1933
    %v1935 = vadd.f32 %v1931, %v1934
    %vm1936 = vweird.f32 %v1930
    %vm1937 = vweird.f32 %v1931
    %vm1938 = vmor %vm1936, %vm1937
    %v1939 = vsel %vm1938, %v1931, %v1935
    %v1940 = vand.u32 2147483647, %v1930
    %vm1941 = vcmp.eq.f32.partialorder %v1940, 8.507059e+37
    %v1942 = vand.u32 %v1930, 2147483648
    %v1943 = vor.u32 1.1754944e-38, %v1942
    %v1944 = vsel %vm1941, %v1943, %v1939
    %v1945 = vmul.f32 %v1920, %v1944
    %v1946 = vmin.f32 %v1945, 1.0
    %v1947 = vmax.f32 %v1946, -1.0
    %v1948 = vmul.f32 %v1667, %v1667
    %v1949 = vmin.f32 16.0, %v1948
    %v1950 = vmul.f32 %v1949, 2.1237322e-06
    %v1951 = vadd.f32 %v1950, 0.00028619796
    %v1952 = vmul.f32 %v1949, %v1951
    %v1953 = vadd.f32 %v1952, 0.0036580483
    %v1954 = vmul.f32 %v1949, %v1953
    %v1955 = vadd.f32 %v1954, 0.05243302
    %v1956 = vmul.f32 %v1949, %v1955
    %v1957 = vadd.f32 %v1956, 0.18741608
    %v1958 = vmul.f32 %v1949, %v1957
    %v1959 = vadd.f32 %v1958, 1.1283791
    %v1960 = vmul.f32 %v1667, %v1959
    %v1961 = vmul.f32 %v1949, 3.8918573e-05
    %v1962 = vadd.f32 %v1961, 0.001143296
    %v1963 = vmul.f32 %v1949, %v1962
    %v1964 = vadd.f32 %v1963, 0.014752088
    %v1965 = vmul.f32 %v1949, %v1964
    %v1966 = vadd.f32 %v1965, 0.112945676
    %v1967 = vmul.f32 %v1949, %v1966
    %v1968 = vadd.f32 %v1967, 0.4994258
    %v1969 = vmul.f32 %v1949, %v1968
    %v1970 = vadd.f32 %v1969, 1.0
    %v1971 = vrcp.pop %v1970
    %v1972 = vmul.f32 %v1970, %v1971
    %v1973 = vsub.f32 1.0, %v1972
    %v1974 = vmul.f32 %v1971, %v1973
    %v1975 = vadd.f32 %v1971, %v1974
    %vm1976 = vweird.f32 %v1970
    %vm1977 = vweird.f32 %v1971
    %vm1978 = vmor %vm1976, %vm1977
    %v1979 = vsel %vm1978, %v1971, %v1975
    %v1980 = vand.u32 2147483647, %v1970
    %vm1981 = vcmp.eq.f32.partialorder %v1980, 8.507059e+37
    %v1982 = vand.u32 %v1970, 2147483648
    %v1983 = vor.u32 1.1754944e-38, %v1982
    %v1984 = vsel %vm1981, %v1983, %v1979
    %v1985 = vmul.f32 %v1960, %v1984
    %v1986 = vmin.f32 %v1985, 1.0
    %v1987 = vmax.f32 %v1986, -1.0
    %v1988 = vadd.f32 %v1707, 1.0
    %v1989 = vadd.f32 %v1747, 1.0
    %v1990 = vadd.f32 %v1787, 1.0
    %v1991 = vadd.f32 %v1827, 1.0
    %v1992 = vadd.f32 %v1867, 1.0
    %v1993 = vadd.f32 %v1907, 1.0
    %v1994 = vadd.f32 %v1947, 1.0
    %v1995 = vadd.f32 %v1987, 1.0
    %v1996 = vmul.f32 %v1652, %v1988
    %v1997 = vmul.f32 %v1653, %v1989
    %v1998 = vmul.f32 %v1654, %v1990
    %v1999 = vmul.f32 %v1655, %v1991
    %v2000 = vmul.f32 %v1656, %v1992
    %v2001 = vmul.f32 %v1657, %v1993
    %v2002 = vmul.f32 %v1658, %v1994
    %v2003 = vmul.f32 %v1659, %v1995
    %v2004 = vpack.c.bf16 %v1998, %v1996
    %v2005 = vpack.c.bf16 %v1999, %v1997
    %v2006 = vpack.c.bf16 %v2002, %v2000
    %v2007 = vpack.c.bf16 %v2003, %v2001
    %v2008 = vld [vmem:[#allocation15 + $0x80] sm:$0xf]
    %v2009 = vld [vmem:[#allocation15 + $0x84] sm:$0xf]
    %v2010 = vld [vmem:[#allocation15 + $0x88] sm:$0xf]
    %v2011 = vld [vmem:[#allocation15 + $0x8c] sm:$0xf]
    %v2012 = vld [vmem:[#allocation15 + $0x90] sm:$0xf]
    %v2013 = vld [vmem:[#allocation15 + $0x94] sm:$0xf]
    %v2014 = vld [vmem:[#allocation15 + $0x98] sm:$0xf]
    %v2015 = vld [vmem:[#allocation15 + $0x9c] sm:$0xf]
    %v2016 = vld [vmem:[#allocation15 + $0xa0] sm:$0xf]
    %v2017 = vld [vmem:[#allocation15 + $0xa4] sm:$0xf]
    %v2018 = vld [vmem:[#allocation15 + $0xa8] sm:$0xf]
    %v2019 = vld [vmem:[#allocation15 + $0xac] sm:$0xf]
    %v2020 = vld [vmem:[#allocation15 + $0xb0] sm:$0xf]
    %v2021 = vld [vmem:[#allocation15 + $0xb4] sm:$0xf]
    %v2022 = vld [vmem:[#allocation15 + $0xb8] sm:$0xf]
    %v2023 = vld [vmem:[#allocation15 + $0xbc] sm:$0xf]
    %v2024 = vld [vmem:[#allocation15 + $0xc0] sm:$0xf]
    %v2025 = vld [vmem:[#allocation15 + $0xc4] sm:$0xf]
    %v2026 = vld [vmem:[#allocation15 + $0xc8] sm:$0xf]
    %v2027 = vld [vmem:[#allocation15 + $0xcc] sm:$0xf]
    %v2028 = vld [vmem:[#allocation15 + $0xd0] sm:$0xf]
    %v2029 = vld [vmem:[#allocation15 + $0xd4] sm:$0xf]
    %v2030 = vld [vmem:[#allocation15 + $0xd8] sm:$0xf]
    %v2031 = vld [vmem:[#allocation15 + $0xdc] sm:$0xf]
    %v2032 = vld [vmem:[#allocation15 + $0xe0] sm:$0xf]
    %v2033 = vld [vmem:[#allocation15 + $0xe4] sm:$0xf]
    %v2034 = vld [vmem:[#allocation15 + $0xe8] sm:$0xf]
    %v2035 = vld [vmem:[#allocation15 + $0xec] sm:$0xf]
    %v2036 = vld [vmem:[#allocation15 + $0xf0] sm:$0xf]
    %v2037 = vld [vmem:[#allocation15 + $0xf4] sm:$0xf]
    %v2038 = vld [vmem:[#allocation15 + $0xf8] sm:$0xf]
    %v2039 = vld [vmem:[#allocation15 + $0xfc] sm:$0xf]
    %v2072 = vunpack.c.l.b16 %v2008
    %v2073 = vunpack.c.l.b16 %v2009
    %v2074 = vunpack.c.l.b16 %v2010
    %v2075 = vunpack.c.l.b16 %v2011
    %v2076 = vunpack.c.l.b16 %v2012
    %v2077 = vunpack.c.l.b16 %v2013
    %v2078 = vunpack.c.l.b16 %v2014
    %v2079 = vunpack.c.l.b16 %v2015
    %v2080 = vunpack.c.l.b16 %v2016
    %v2081 = vunpack.c.l.b16 %v2017
    %v2082 = vunpack.c.l.b16 %v2018
    %v2083 = vunpack.c.l.b16 %v2019
    %v2084 = vunpack.c.l.b16 %v2020
    %v2085 = vunpack.c.l.b16 %v2021
    %v2086 = vunpack.c.l.b16 %v2022
    %v2087 = vunpack.c.l.b16 %v2023
    %v2088 = vunpack.c.l.b16 %v2024
    %v2089 = vunpack.c.l.b16 %v2025
    %v2090 = vunpack.c.l.b16 %v2026
    %v2091 = vunpack.c.l.b16 %v2027
    %v2092 = vunpack.c.l.b16 %v2028
    %v2093 = vunpack.c.l.b16 %v2029
    %v2094 = vunpack.c.l.b16 %v2030
    %v2095 = vunpack.c.l.b16 %v2031
    %v2096 = vunpack.c.l.b16 %v2032
    %v2097 = vunpack.c.l.b16 %v2033
    %v2098 = vunpack.c.l.b16 %v2034
    %v2099 = vunpack.c.l.b16 %v2035
    %v2100 = vunpack.c.l.b16 %v2036
    %v2101 = vunpack.c.l.b16 %v2037
    %v2102 = vunpack.c.l.b16 %v2038
    %v2103 = vunpack.c.l.b16 %v2039
    %v2104 = vpack.c.b16 %v2073, %v2072
    %v2105 = vpack.c.b16 %v2075, %v2074
    %v2106 = vpack.c.b16 %v2077, %v2076
    %v2107 = vpack.c.b16 %v2079, %v2078
    %v2108 = vpack.c.b16 %v2081, %v2080
    %v2109 = vpack.c.b16 %v2083, %v2082
    %v2110 = vpack.c.b16 %v2085, %v2084
    %v2111 = vpack.c.b16 %v2087, %v2086
    %v2112 = vpack.c.b16 %v2089, %v2088
    %v2113 = vpack.c.b16 %v2091, %v2090
    %v2114 = vpack.c.b16 %v2093, %v2092
    %v2115 = vpack.c.b16 %v2095, %v2094
    %v2116 = vpack.c.b16 %v2097, %v2096
    %v2117 = vpack.c.b16 %v2099, %v2098
    %v2118 = vpack.c.b16 %v2101, %v2100
    %v2119 = vpack.c.b16 %v2103, %v2102
    %2136 = vmatpush.bf16.msra.mxu0 %v2111
    %2137 = vmatpush.bf16.msra.mxu0 %v2110
    %2138 = vmatpush.bf16.msra.mxu0 %v2109
    %2139 = vmatpush.bf16.msra.mxu0 %v2108
    %2140 = vmatpush.bf16.msra.mxu0 %v2107
    %2141 = vmatpush.bf16.msra.mxu0 %v2106
    %2142 = vmatpush.bf16.msra.mxu0 %v2105
    %2143 = vmatpush.bf16.msra.mxu0 %v2104
    %2144 = vmatmul.bf16.gmra.mxu0 %v2004
    %v2145 = vpop.f32.mrf.mxu0
    %v2146 = vadd.f32 0.0, %v2145
    %v2147 = vpop.f32.mrf.mxu0
    %v2148 = vadd.f32 0.0, %v2147
    %2149 = vmatmul.bf16.gmra.mxu0 %v2006
    %v2150 = vpop.f32.mrf.mxu0
    %v2151 = vadd.f32 0.0, %v2150
    %v2152 = vpop.f32.mrf.mxu0
    %v2153 = vadd.f32 0.0, %v2152
    %2154 = vdwg.mxu0
    %2155 = vmatpush.bf16.msra.mxu0 %v2119
    %2156 = vmatpush.bf16.msra.mxu0 %v2118
    %2157 = vmatpush.bf16.msra.mxu0 %v2117
    %2158 = vmatpush.bf16.msra.mxu0 %v2116
    %2159 = vmatpush.bf16.msra.mxu0 %v2115
    %2160 = vmatpush.bf16.msra.mxu0 %v2114
    %2161 = vmatpush.bf16.msra.mxu0 %v2113
    %2162 = vmatpush.bf16.msra.mxu0 %v2112
    %2163 = vmatmul.bf16.gmra.mxu0 %v2005
    %v2164 = vpop.f32.mrf.mxu0
    %v2165 = vadd.f32 %v2146, %v2164
    %v2166 = vpop.f32.mrf.mxu0
    %v2167 = vadd.f32 %v2148, %v2166
    %2168 = vmatmul.bf16.gmra.mxu0 %v2007
    %v2169 = vpop.f32.mrf.mxu0
    %v2170 = vadd.f32 %v2151, %v2169
    %v2171 = vpop.f32.mrf.mxu0
    %v2172 = vadd.f32 %v2153, %v2171
    %2173 = vdwg.mxu0
    %v2206 = vunpack.c.l.b16 %v1480
    %v2207 = vunpack.c.l.b16 %v1481
    %v2208 = vunpack.c.l.b16 %v1482
    %v2209 = vunpack.c.l.b16 %v1483
    %v2210 = vunpack.c.l.b16 %v1484
    %v2211 = vunpack.c.l.b16 %v1485
    %v2212 = vunpack.c.l.b16 %v1486
    %v2213 = vunpack.c.l.b16 %v1487
    %v2214 = vunpack.c.l.b16 %v1488
    %v2215 = vunpack.c.l.b16 %v1489
    %v2216 = vunpack.c.l.b16 %v1490
    %v2217 = vunpack.c.l.b16 %v1491
    %v2218 = vunpack.c.l.b16 %v1492
    %v2219 = vunpack.c.l.b16 %v1493
    %v2220 = vunpack.c.l.b16 %v1494
    %v2221 = vunpack.c.l.b16 %v1495
    %v2222 = vunpack.c.l.b16 %v1496
    %v2223 = vunpack.c.l.b16 %v1497
    %v2224 = vunpack.c.l.b16 %v1498
    %v2225 = vunpack.c.l.b16 %v1499
    %v2226 = vunpack.c.l.b16 %v1500
    %v2227 = vunpack.c.l.b16 %v1501
    %v2228 = vunpack.c.l.b16 %v1502
    %v2229 = vunpack.c.l.b16 %v1503
    %v2230 = vunpack.c.l.b16 %v1504
    %v2231 = vunpack.c.l.b16 %v1505
    %v2232 = vunpack.c.l.b16 %v1506
    %v2233 = vunpack.c.l.b16 %v1507
    %v2234 = vunpack.c.l.b16 %v1508
    %v2235 = vunpack.c.l.b16 %v1509
    %v2236 = vunpack.c.l.b16 %v1510
    %v2237 = vunpack.c.l.b16 %v1511
    %v2238 = vpack.c.b16 %v2207, %v2206
    %v2239 = vpack.c.b16 %v2209, %v2208
    %v2240 = vpack.c.b16 %v2211, %v2210
    %v2241 = vpack.c.b16 %v2213, %v2212
    %v2242 = vpack.c.b16 %v2215, %v2214
    %v2243 = vpack.c.b16 %v2217, %v2216
    %v2244 = vpack.c.b16 %v2219, %v2218
    %v2245 = vpack.c.b16 %v2221, %v2220
    %v2246 = vpack.c.b16 %v2223, %v2222
    %v2247 = vpack.c.b16 %v2225, %v2224
    %v2248 = vpack.c.b16 %v2227, %v2226
    %v2249 = vpack.c.b16 %v2229, %v2228
    %v2250 = vpack.c.b16 %v2231, %v2230
    %v2251 = vpack.c.b16 %v2233, %v2232
    %v2252 = vpack.c.b16 %v2235, %v2234
    %v2253 = vpack.c.b16 %v2237, %v2236
    %2270 = vmatpush.bf16.msra.mxu0 %v2245
    %2271 = vmatpush.bf16.msra.mxu0 %v2244
    %2272 = vmatpush.bf16.msra.mxu0 %v2243
    %2273 = vmatpush.bf16.msra.mxu0 %v2242
    %2274 = vmatpush.bf16.msra.mxu0 %v2241
    %2275 = vmatpush.bf16.msra.mxu0 %v2240
    %2276 = vmatpush.bf16.msra.mxu0 %v2239
    %2277 = vmatpush.bf16.msra.mxu0 %v2238
    %2278 = vmatmul.bf16.gmra.mxu0 %v1476
    %v2279 = vpop.f32.mrf.mxu0
    %v2280 = vadd.f32 %v2165, %v2279
    %v2281 = vpop.f32.mrf.mxu0
    %v2282 = vadd.f32 %v2167, %v2281
    %2283 = vmatmul.bf16.gmra.mxu0 %v1478
    %v2284 = vpop.f32.mrf.mxu0
    %v2285 = vadd.f32 %v2170, %v2284
    %v2286 = vpop.f32.mrf.mxu0
    %v2287 = vadd.f32 %v2172, %v2286
    %2288 = vdwg.mxu0
    %2289 = vmatpush.bf16.msra.mxu0 %v2253
    %2290 = vmatpush.bf16.msra.mxu0 %v2252
    %2291 = vmatpush.bf16.msra.mxu0 %v2251
    %2292 = vmatpush.bf16.msra.mxu0 %v2250
    %2293 = vmatpush.bf16.msra.mxu0 %v2249
    %2294 = vmatpush.bf16.msra.mxu0 %v2248
    %2295 = vmatpush.bf16.msra.mxu0 %v2247
    %2296 = vmatpush.bf16.msra.mxu0 %v2246
    %2297 = vmatmul.bf16.gmra.mxu0 %v1477
    %v2298 = vpop.f32.mrf.mxu0
    %v2299 = vadd.f32 %v2280, %v2298
    %v2300 = vpop.f32.mrf.mxu0
    %v2301 = vadd.f32 %v2282, %v2300
    %2302 = vmatmul.bf16.gmra.mxu0 %v1479
    %v2303 = vpop.f32.mrf.mxu0
    %v2304 = vadd.f32 %v2285, %v2303
    %v2305 = vpop.f32.mrf.mxu0
    %v2306 = vadd.f32 %v2287, %v2305
    %2307 = vdwg.mxu0
    %v2308 = vadd.f32 %v882, %v2299
    %v2309 = vadd.f32 %v883, %v2301
    %v2310 = vadd.f32 %v884, %v2304
    %v2311 = vadd.f32 %v885, %v2306
    %v2312 = vld [vmem:[%s14] sm:$0x1]
    %v2314 = vperm.slane %v2312, 0
    %v2316 = vadd.f32 %v2308, %v2314
    %v2317 = vadd.f32 %v2309, %v2314
    %v2318 = vadd.f32 %v2310, %v2314
    %v2319 = vadd.f32 %v2311, %v2314
    %2320 = vst [vmem:[#allocation2] sm:$0xff] %v2316
    %2321 = vst [vmem:[#allocation2 + $0x8] sm:$0xff] %v2317
    %2322 = vst [vmem:[#allocation2 + $0x10] sm:$0xff] %v2318
    %2323 = vst [vmem:[#allocation2 + $0x18] sm:$0xff] %v2319
    // Predicated region
    $region98: #{tpu_custom_call.1} parent=1 // pred_check
      %p2324 = pneg %p176
    $region99: #{tpu_custom_call.1} parent=1 // pred_check_branch
      %2326 = sbr.rel (%p2324) target = $region101
    $region100: #{tpu_custom_call.1} parent=1 // pred_region
      %2327 = vst [vmem:[#allocation17] sm:$0xff] %v2316
      %2328 = vst [vmem:[#allocation17 + $0x8] sm:$0xff] %v2317
      %2329 = vst [vmem:[#allocation17 + $0x10] sm:$0xff] %v2318
      %2330 = vst [vmem:[#allocation17 + $0x18] sm:$0xff] %v2319
    $region101: #{tpu_custom_call.1} parent=1 // pred_fallthru
      _
    // Predicated region
    $region102: #{tpu_custom_call.1} parent=1 // pred_check
      _
    $region103: #{tpu_custom_call.1} parent=1 // pred_check_branch
      %2332 = sbr.rel (0) target = $region105
    $region104: #{tpu_custom_call.1} parent=1 // pred_region
      %2334 = vsyncadd [#allocation5], 0
      %s2335 = sshll.u32 [#allocation17], 4
      %s2336 = int_to_ptr.vmem [resolvable:$true] %s2335
      %s2337 = sshll.u32 %s15, 4
      %s2338 = int_to_ptr.hbm [resolvable:$true] %s2337
      %2343 = dma.vmem_to_hbm [thread:$0]  %s2336, 512, %s2338, [#allocation5], 128, 128, 8
    $region105: #{tpu_custom_call.1} parent=1 // pred_fallthru
      _
    // Predicated region
    $region106: #{tpu_custom_call.1} parent=1 // pred_check
      _
    $region107: #{tpu_custom_call.1} parent=1 // pred_check_branch
      %2345 = sbr.rel (0) target = $region109
    $region108: #{tpu_custom_call.1} parent=1 // pred_region
      %2347 = dma.done [#allocation5], 512
    $region109: #{tpu_custom_call.1} parent=1 // pred_fallthru
      _
    %2348 = vsyncpa [#allocation4], 1
    %2349 = vsyncpa [#allocation7], 1
    %2350 = vsyncpa [#allocation10], 1
    %2351 = vsyncpa [#allocation13], 1
    %2352 = vsyncpa [#allocation16], 1
    %2353 = vsyncpa [#allocation5], 1

</llo_original>
